<compile_context>
chip_gen: v6e
topology: v6e:2x2x1
jax: 0.10.0
libtpu: 0.0.40
codegen_flags: <defaults>
</compile_context>

<pallas_src>
import functools
import math

import jax
import jax.numpy as jnp
from jax.experimental import pallas as pl
from jax.experimental.pallas import tpu as pltpu

VOCAB = 768
LN_EPS = 1e-12
_SQRT_HALF = 0.7071067811865476


def _round_up(n, m):
    return ((n + m - 1) // m) * m


def _gelu_erf(x):
    return x * 0.5 * (1.0 + jax.lax.erf(x * _SQRT_HALF))


def _head_kernel(x_ref, w1_ref, b1_ref, gamma_ref, beta_ref, w2_ref, b2_ref,
                 o_ref, *, mm_dtype, approx_gelu):
    # x_ref:  (TM, H)  f32 rows from HBM (cast to mm_dtype in-kernel).
    # w1_ref: (H, H)   K-major (in, out) -- pre-transposed on the host.
    # w2_ref: (H, VOCAB) K-major (in, out).
    # b1/gamma/beta: (1, H) f32;  b2: (1, VOCAB) f32.
    x = x_ref[...].astype(mm_dtype)

    # dense: x @ W1^T  (plain K-major dot -> MXU, f32 accumulation)
    h = jnp.dot(x, w1_ref[...], preferred_element_type=jnp.float32)
    h = h + b1_ref[...]

    # GELU (f32).  Exact erf form by default (matches PyTorch);
    # approximate=True moves the transcendental onto the EUP slot.
    if approx_gelu:
        h = jax.nn.gelu(h, approximate=True)
    else:
        h = _gelu_erf(h)

    # LayerNorm over last dim (biased variance, eps inside rsqrt), f32.
    mean = jnp.mean(h, axis=-1, keepdims=True)
    centered = h - mean
    var = jnp.mean(centered * centered, axis=-1, keepdims=True)
    h = centered * jax.lax.rsqrt(var + LN_EPS)
    h = h * gamma_ref[...] + beta_ref[...]

    # decoder: h @ W2^T + b2  (lane-dense 768-wide output)
    y = jnp.dot(h.astype(mm_dtype), w2_ref[...],
                preferred_element_type=jnp.float32)
    y = y + b2_ref[...]

    o_ref[...] = y.astype(o_ref.dtype)


def visual_lm_prediction_head(x, params, *, tile_m=512, use_bf16=True,
                              use_tanh_gelu=False, out_dtype=None):
    """Fused dense -> GELU -> LayerNorm -> decoder head.

    x: (B, S, H) float32.  params: dict (see init_params).  -> (B, S, VOCAB).

    tile_m:        target rows per grid step (512 suits the 128 MiB VMEM
                   chips; it is clamped so the grid keeps >= 4 steps when N
                   allows, i.e. >= 2 iterations per v7x TensorCore).
    use_bf16:      feed the MXU bf16 operands with f32 accumulation (default).
                   GELU / LayerNorm stay f32; the post-LN activations are cast
                   to bf16 for the decoder matmul (slightly looser numerics).
                   False = exact f32 everywhere.
    use_tanh_gelu: tanh-approximate GELU (EUP slot) instead of exact erf.
    out_dtype:     output dtype (defaults to x.dtype).
    """
    B, S, H = x.shape
    N = B * S
    out_dtype = x.dtype if out_dtype is None else out_dtype
    mm_dtype = jnp.bfloat16 if use_bf16 else jnp.float32
    # NOTE: H not a multiple of 128 only costs padded MXU passes (perf, not
    # correctness); callers that care (v5e) should pad H themselves.

    # Row tile: sublane-aligned, capped by tile_m, clamped so the grid keeps
    # >= 4 steps when N allows (>= 2 per v7x TensorCore).
    align = 8
    tm = max(align, min(int(tile_m), _round_up(pl.cdiv(N, 4), align)))
    grid = (pl.cdiv(N, tm),)

    x2 = x.reshape(N, H)          # metadata-only reshape; no host pad / cast

    # One-time host transpose to K-major (in, out) layout + optional bf16 cast.
    w1 = params["dense_w"].T.astype(mm_dtype)             # (H, H)
    w2 = params["dec_w"].T.astype(mm_dtype)               # (H, VOCAB)
    b1 = params["dense_b"].reshape(1, H).astype(jnp.float32)
    gamma = params["ln_gamma"].reshape(1, H).astype(jnp.float32)
    beta = params["ln_beta"].reshape(1, H).astype(jnp.float32)
    b2 = params["dec_b"].reshape(1, VOCAB).astype(jnp.float32)

    # VMEM budget: resident (single-buffered) weights + double-buffered x/out
    # tiles + f32 intermediates, with margin, capped by real per-core VMEM.
    w_item = jnp.dtype(mm_dtype).itemsize
    o_item = jnp.dtype(out_dtype).itemsize
    weight_bytes = (H * H + H * VOCAB) * w_item + (3 * H + VOCAB) * 4
    tile_bytes = 2 * (tm * H * 4 + tm * VOCAB * o_item)    # double-buffered
    interm_bytes = tm * H * (8 + 2 * w_item) + tm * VOCAB * 4
    vmem_limit = int(1.25 * (weight_bytes + tile_bytes + interm_bytes))
    vmem_limit = max(vmem_limit, 32 << 20)
    try:
        vmem_cap = int(pltpu.get_tpu_info().vmem_capacity_bytes)
    except Exception:
        vmem_cap = 64 << 20                                 # conservative (v7x)
    vmem_limit = min(vmem_limit, int(0.90 * vmem_cap))

    cost = pl.CostEstimate(
        flops=2 * N * H * (H + VOCAB),
        transcendentals=N * H,                              # erf/tanh in GELU
        bytes_accessed=int(N * H * 4 + weight_bytes + N * VOCAB * o_item))

    kernel = functools.partial(_head_kernel, mm_dtype=mm_dtype,
                               approx_gelu=use_tanh_gelu)
    full = lambda i: (0, 0)

    def build(weight_pipeline_mode):
        wk = ({} if weight_pipeline_mode is None
              else {"pipeline_mode": weight_pipeline_mode})
        in_specs = [
            pl.BlockSpec((tm, H), lambda i: (i, 0)),        # x rows (pipelined)
            pl.BlockSpec((H, H), full, **wk),               # W1 (K-major)
            pl.BlockSpec((1, H), full, **wk),               # b1
            pl.BlockSpec((1, H), full, **wk),               # gamma
            pl.BlockSpec((1, H), full, **wk),               # beta
            pl.BlockSpec((H, VOCAB), full, **wk),           # W2 (K-major)
            pl.BlockSpec((1, VOCAB), full, **wk),           # b2
        ]
        return pl.pallas_call(
            kernel,
            out_shape=jax.ShapeDtypeStruct((N, VOCAB), out_dtype),
            grid_spec=pltpu.PrefetchScalarGridSpec(
                num_scalar_prefetch=0,
                grid=grid,
                in_specs=in_specs,
                out_specs=pl.BlockSpec((tm, VOCAB), lambda i: (i, 0)),
            ),
            compiler_params=pltpu.CompilerParams(
                dimension_semantics=("parallel",),
                vmem_limit_bytes=vmem_limit),
            cost_estimate=cost,
        )

    try:
        # Grid-invariant weight slabs: single-deep pipelining (resident once).
        out = build(pl.Buffered(1))(x2, w1, b1, gamma, beta, w2, b2)
    except Exception:
        # Compatibility fallback (builds rejecting Buffered(1)): only allowed
        # when DOUBLE-buffered weights still fit comfortably in VMEM;
        # otherwise re-raise instead of silently risking a v7x VMEM OOM.
        if 1.25 * (2 * weight_bytes + tile_bytes + interm_bytes) > 0.8 * vmem_cap:
            raise
        out = build(None)(x2, w1, b1, gamma, beta, w2, b2)

    return out.reshape(B, S, VOCAB)


def init_params(key, hidden_size):
    """Deterministic synthetic parameters matching the module's shapes."""
    k1, k2, k3, _, _ = jax.random.split(key, 5)
    scale1 = 1.0 / math.sqrt(hidden_size)
    return {
        # nn.Linear(H, H): weight (H, H) in (out, in) layout, bias (H,)
        "dense_w": jax.random.uniform(k1, (hidden_size, hidden_size),
                                      jnp.float32, -scale1, scale1),
        "dense_b": jax.random.uniform(k2, (hidden_size,),
                                      jnp.float32, -scale1, scale1),
        # LayerNorm(H): gamma=1, beta=0 (torch default init)
        "ln_gamma": jnp.ones((hidden_size,), jnp.float32),
        "ln_beta": jnp.zeros((hidden_size,), jnp.float32),
        # nn.Linear(H, 768, bias=False): weight (768, H) in (out, in) layout
        "dec_w": jax.random.uniform(k3, (VOCAB, hidden_size),
                                    jnp.float32, -scale1, scale1),
        # self.bias = Parameter(zeros(768)), tied to decoder.bias
        "dec_b": jnp.zeros((VOCAB,), jnp.float32),
    }


def reference_forward(x, params):
    """Plain-JAX reference (full f32, erf GELU) for correctness checking."""
    hp = jax.lax.Precision.HIGHEST
    h = jnp.einsum("bsh,oh->bso", x, params["dense_w"],
                   precision=hp) + params["dense_b"]
    h = _gelu_erf(h)
    mean = jnp.mean(h, axis=-1, keepdims=True)
    var = jnp.mean((h - mean) ** 2, axis=-1, keepdims=True)
    h = (h - mean) * jax.lax.rsqrt(var + LN_EPS)
    h = h * params["ln_gamma"] + params["ln_beta"]
    y = jnp.einsum("bsh,oh->bso", h, params["dec_w"],
                   precision=hp) + params["dec_b"]
    return y


if __name__ == "__main__":
    key = jax.random.PRNGKey(0)
    kx, kp, kx2 = jax.random.split(key, 3)

    B, S, H = 2, 8, 128  # small (batch, seq, hidden) consistent with the module
    x = jax.random.normal(kx, (B, S, H), jnp.float32)
    params = init_params(kp, H)
    y_ref = reference_forward(x, params)

    # Exact f32 path (tight tolerance).
    y32 = jax.block_until_ready(
        visual_lm_prediction_head(x, params, use_bf16=False))
    assert y32.shape == (B, S, VOCAB)
    assert jnp.allclose(y32, y_ref, atol=1e-4, rtol=1e-4), "f32 kernel mismatch"

    # Default bf16-MXU path (f32 accumulation, looser numerics).
    y16 = jax.block_until_ready(visual_lm_prediction_head(x, params))
    assert y16.shape == (B, S, VOCAB)
    assert jnp.allclose(y16, y_ref, atol=1e-1, rtol=5e-2), "bf16 kernel mismatch"

    # Ragged row count (N not a multiple of the row tile) exercises the
    # masked last block now that the host-side pad/slice is gone.
    xr = jax.random.normal(kx2, (1, 5, H), jnp.float32)
    yr_ref = reference_forward(xr, params)
    yr = jax.block_until_ready(visual_lm_prediction_head(xr, params))
    assert yr.shape == (1, 5, VOCAB)
    assert jnp.all(jnp.isfinite(yr)), "ragged kernel produced non-finite values"
    assert jnp.allclose(yr, yr_ref, atol=1e-1, rtol=5e-2), "ragged kernel mismatch"

    print("KERNEL_OK")
</pallas_src>

<mosaic_0001>
module attributes {stable_mosaic.version = 11 : i64} {
  func.func @_head_kernel(%arg0: i32, %arg1: memref<8x128xf32, #tpu.memory_space<vmem>>, %arg2: memref<128x128xf32, #tpu.memory_space<vmem>>, %arg3: memref<1x128xf32, #tpu.memory_space<vmem>>, %arg4: memref<1x128xf32, #tpu.memory_space<vmem>>, %arg5: memref<1x128xf32, #tpu.memory_space<vmem>>, %arg6: memref<128x768xf32, #tpu.memory_space<vmem>>, %arg7: memref<1x768xf32, #tpu.memory_space<vmem>>, %arg8: memref<8x768xf32, #tpu.memory_space<vmem>>) attributes {dimension_semantics = [#tpu.dimension_semantics<parallel>], iteration_bounds = array<i64: 2>, scalar_prefetch = 0 : i64, scratch_operands = 0 : i64, tpu.core_type = #tpu.core_type<tc>, window_params = [{transform_indices = @transform_0, window_bounds = array<i64: 8, 128>}, {pipeline_mode = #tpu.pipeline_mode<synchronous>, transform_indices = @transform_1, window_bounds = array<i64: 128, 128>}, {pipeline_mode = #tpu.pipeline_mode<synchronous>, transform_indices = @transform_2, window_bounds = array<i64: 1, 128>}, {pipeline_mode = #tpu.pipeline_mode<synchronous>, transform_indices = @transform_3, window_bounds = array<i64: 1, 128>}, {pipeline_mode = #tpu.pipeline_mode<synchronous>, transform_indices = @transform_4, window_bounds = array<i64: 1, 128>}, {pipeline_mode = #tpu.pipeline_mode<synchronous>, transform_indices = @transform_5, window_bounds = array<i64: 128, 768>}, {pipeline_mode = #tpu.pipeline_mode<synchronous>, transform_indices = @transform_6, window_bounds = array<i64: 1, 768>}, {transform_indices = @transform_7, window_bounds = array<i64: 8, 768>}]} {
    %c0 = arith.constant 0 : index
    %c0_0 = arith.constant 0 : index
    %0 = vector.load %arg1[%c0, %c0_0] : memref<8x128xf32, #tpu.memory_space<vmem>>, vector<8x128xf32>
    %c0_1 = arith.constant 0 : index
    %c0_2 = arith.constant 0 : index
    %1 = vector.load %arg2[%c0_1, %c0_2] : memref<128x128xf32, #tpu.memory_space<vmem>>, vector<128x128xf32>
    %cst = arith.constant dense<0.000000e+00> : vector<8x128xf32>
    %2 = tpu.matmul %0, %1, %cst {dimension_numbers = #tpu.dot_dimension_numbers<[1], [0], [0], [1], [0, 0, 1, 1], [], []>} : vector<8x128xf32>, vector<128x128xf32>, vector<8x128xf32> -> vector<8x128xf32>
    %c0_3 = arith.constant 0 : index
    %c0_4 = arith.constant 0 : index
    %3 = vector.load %arg3[%c0_3, %c0_4] : memref<1x128xf32, #tpu.memory_space<vmem>>, vector<1x128xf32>
    %4 = vector.broadcast %3 : vector<1x128xf32> to vector<8x128xf32>
    %5 = arith.addf %2, %4 : vector<8x128xf32>
    %cst_5 = arith.constant 5.000000e-01 : f32
    %6 = vector.broadcast %cst_5 : f32 to vector<8x128xf32>
    %7 = arith.mulf %5, %6 : vector<8x128xf32>
    %cst_6 = arith.constant 0.707106769 : f32
    %8 = vector.broadcast %cst_6 : f32 to vector<8x128xf32>
    %9 = arith.mulf %5, %8 : vector<8x128xf32>
    %10 = math.erf %9 : vector<8x128xf32>
    %cst_7 = arith.constant 1.000000e+00 : f32
    %11 = vector.broadcast %cst_7 : f32 to vector<8x128xf32>
    %12 = arith.addf %11, %10 : vector<8x128xf32>
    %13 = arith.mulf %7, %12 : vector<8x128xf32>
    %cst_8 = arith.constant dense<0.000000e+00> : vector<8xf32>
    %14 = vector.multi_reduction <add>, %13, %cst_8 [1] : vector<8x128xf32> to vector<8xf32>
    %15 = vector.shape_cast %14 : vector<8xf32> to vector<8x1xf32>
    %cst_9 = arith.constant 1.280000e+02 : f32
    %16 = vector.broadcast %cst_9 : f32 to vector<8x1xf32>
    %17 = arith.divf %15, %16 : vector<8x1xf32>
    %18 = vector.broadcast %17 : vector<8x1xf32> to vector<8x128xf32>
    %19 = arith.subf %13, %18 : vector<8x128xf32>
    %20 = arith.mulf %19, %19 : vector<8x128xf32>
    %cst_10 = arith.constant dense<0.000000e+00> : vector<8xf32>
    %21 = vector.multi_reduction <add>, %20, %cst_10 [1] : vector<8x128xf32> to vector<8xf32>
    %22 = vector.shape_cast %21 : vector<8xf32> to vector<8x1xf32>
    %cst_11 = arith.constant 1.280000e+02 : f32
    %23 = vector.broadcast %cst_11 : f32 to vector<8x1xf32>
    %24 = arith.divf %22, %23 : vector<8x1xf32>
    %cst_12 = arith.constant 9.99999996E-13 : f32
    %25 = vector.broadcast %cst_12 : f32 to vector<8x1xf32>
    %26 = arith.addf %24, %25 : vector<8x1xf32>
    %27 = math.rsqrt %26 : vector<8x1xf32>
    %28 = vector.broadcast %27 : vector<8x1xf32> to vector<8x128xf32>
    %29 = arith.mulf %19, %28 : vector<8x128xf32>
    %c0_13 = arith.constant 0 : index
    %c0_14 = arith.constant 0 : index
    %30 = vector.load %arg4[%c0_13, %c0_14] : memref<1x128xf32, #tpu.memory_space<vmem>>, vector<1x128xf32>
    %31 = vector.broadcast %30 : vector<1x128xf32> to vector<8x128xf32>
    %32 = arith.mulf %29, %31 : vector<8x128xf32>
    %c0_15 = arith.constant 0 : index
    %c0_16 = arith.constant 0 : index
    %33 = vector.load %arg5[%c0_15, %c0_16] : memref<1x128xf32, #tpu.memory_space<vmem>>, vector<1x128xf32>
    %34 = vector.broadcast %33 : vector<1x128xf32> to vector<8x128xf32>
    %35 = arith.addf %32, %34 : vector<8x128xf32>
    %c0_17 = arith.constant 0 : index
    %c0_18 = arith.constant 0 : index
    %36 = vector.load %arg6[%c0_17, %c0_18] : memref<128x768xf32, #tpu.memory_space<vmem>>, vector<128x768xf32>
    %cst_19 = arith.constant dense<0.000000e+00> : vector<8x768xf32>
    %37 = tpu.matmul %35, %36, %cst_19 {dimension_numbers = #tpu.dot_dimension_numbers<[1], [0], [0], [1], [0, 0, 1, 1], [], []>} : vector<8x128xf32>, vector<128x768xf32>, vector<8x768xf32> -> vector<8x768xf32>
    %c0_20 = arith.constant 0 : index
    %c0_21 = arith.constant 0 : index
    %38 = vector.load %arg7[%c0_20, %c0_21] : memref<1x768xf32, #tpu.memory_space<vmem>>, vector<1x768xf32>
    %39 = vector.broadcast %38 : vector<1x768xf32> to vector<8x768xf32>
    %40 = arith.addf %37, %39 : vector<8x768xf32>
    %c0_22 = arith.constant 0 : index
    %c0_23 = arith.constant 0 : index
    %41 = vector.load %arg8[%c0_22, %c0_23] : memref<8x768xf32, #tpu.memory_space<vmem>>, vector<8x768xf32>
    tpu.vector_store %arg8[%c0_22, %c0_23], %40 {strides = array<i32>} : memref<8x768xf32, #tpu.memory_space<vmem>>, vector<8x768xf32>,
    return
  }
  func.func @transform_0(%arg0: i32) -> (i32, i32) {
    %c0_i32 = arith.constant 0 : i32
    %c0_i32_0 = arith.constant 0 : i32
    return %arg0, %c0_i32 : i32, i32
  }
  func.func @transform_1(%arg0: i32) -> (i32, i32) {
    %c0_i32 = arith.constant 0 : i32
    %c0_i32_0 = arith.constant 0 : i32
    %c0_i32_1 = arith.constant 0 : i32
    return %c0_i32, %c0_i32_0 : i32, i32
  }
  func.func @transform_2(%arg0: i32) -> (i32, i32) {
    %c0_i32 = arith.constant 0 : i32
    %c0_i32_0 = arith.constant 0 : i32
    %c0_i32_1 = arith.constant 0 : i32
    return %c0_i32, %c0_i32_0 : i32, i32
  }
  func.func @transform_3(%arg0: i32) -> (i32, i32) {
    %c0_i32 = arith.constant 0 : i32
    %c0_i32_0 = arith.constant 0 : i32
    %c0_i32_1 = arith.constant 0 : i32
    return %c0_i32, %c0_i32_0 : i32, i32
  }
  func.func @transform_4(%arg0: i32) -> (i32, i32) {
    %c0_i32 = arith.constant 0 : i32
    %c0_i32_0 = arith.constant 0 : i32
    %c0_i32_1 = arith.constant 0 : i32
    return %c0_i32, %c0_i32_0 : i32, i32
  }
  func.func @transform_5(%arg0: i32) -> (i32, i32) {
    %c0_i32 = arith.constant 0 : i32
    %c0_i32_0 = arith.constant 0 : i32
    %c0_i32_1 = arith.constant 0 : i32
    return %c0_i32, %c0_i32_0 : i32, i32
  }
  func.func @transform_6(%arg0: i32) -> (i32, i32) {
    %c0_i32 = arith.constant 0 : i32
    %c0_i32_0 = arith.constant 0 : i32
    %c0_i32_1 = arith.constant 0 : i32
    return %c0_i32, %c0_i32_0 : i32, i32
  }
  func.func @transform_7(%arg0: i32) -> (i32, i32) {
    %c0_i32 = arith.constant 0 : i32
    %c0_i32_0 = arith.constant 0 : i32
    return %arg0, %c0_i32 : i32, i32
  }
}

module attributes {stable_mosaic.version = 11 : i64} {
  func.func @_head_kernel(%arg0: i32, %arg1: memref<8x128xf32, #tpu.memory_space<vmem>>, %arg2: memref<128x128xf32, #tpu.memory_space<vmem>>, %arg3: memref<1x128xf32, #tpu.memory_space<vmem>>, %arg4: memref<1x128xf32, #tpu.memory_space<vmem>>, %arg5: memref<1x128xf32, #tpu.memory_space<vmem>>, %arg6: memref<128x768xf32, #tpu.memory_space<vmem>>, %arg7: memref<1x768xf32, #tpu.memory_space<vmem>>, %arg8: memref<8x768xf32, #tpu.memory_space<vmem>>) attributes {dimension_semantics = [#tpu.dimension_semantics<parallel>], iteration_bounds = array<i64: 2>, scalar_prefetch = 0 : i64, scratch_operands = 0 : i64, tpu.core_type = #tpu.core_type<tc>, window_params = [{transform_indices = @transform_0, window_bounds = array<i64: 8, 128>}, {pipeline_mode = #tpu.pipeline_mode<synchronous>, transform_indices = @transform_1, window_bounds = array<i64: 128, 128>}, {pipeline_mode = #tpu.pipeline_mode<synchronous>, transform_indices = @transform_2, window_bounds = array<i64: 1, 128>}, {pipeline_mode = #tpu.pipeline_mode<synchronous>, transform_indices = @transform_3, window_bounds = array<i64: 1, 128>}, {pipeline_mode = #tpu.pipeline_mode<synchronous>, transform_indices = @transform_4, window_bounds = array<i64: 1, 128>}, {pipeline_mode = #tpu.pipeline_mode<synchronous>, transform_indices = @transform_5, window_bounds = array<i64: 128, 768>}, {pipeline_mode = #tpu.pipeline_mode<synchronous>, transform_indices = @transform_6, window_bounds = array<i64: 1, 768>}, {transform_indices = @transform_7, window_bounds = array<i64: 8, 768>}]} {
    %c0 = arith.constant 0 : index
    %c0_0 = arith.constant 0 : index
    %0 = vector.load %arg1[%c0, %c0_0] : memref<8x128xf32, #tpu.memory_space<vmem>>, vector<8x128xf32>
    %c0_1 = arith.constant 0 : index
    %c0_2 = arith.constant 0 : index
    %1 = vector.load %arg2[%c0_1, %c0_2] : memref<128x128xf32, #tpu.memory_space<vmem>>, vector<128x128xf32>
    %cst = arith.constant dense<0.000000e+00> : vector<8x128xf32>
    %2 = tpu.matmul %0, %1, %cst {dimension_numbers = #tpu.dot_dimension_numbers<[1], [0], [0], [1], [0, 0, 1, 1], [], []>} : vector<8x128xf32>, vector<128x128xf32>, vector<8x128xf32> -> vector<8x128xf32>
    %c0_3 = arith.constant 0 : index
    %c0_4 = arith.constant 0 : index
    %3 = vector.load %arg3[%c0_3, %c0_4] : memref<1x128xf32, #tpu.memory_space<vmem>>, vector<1x128xf32>
    %4 = vector.broadcast %3 : vector<1x128xf32> to vector<8x128xf32>
    %5 = arith.addf %2, %4 : vector<8x128xf32>
    %cst_5 = arith.constant 5.000000e-01 : f32
    %6 = vector.broadcast %cst_5 : f32 to vector<8x128xf32>
    %7 = arith.mulf %5, %6 : vector<8x128xf32>
    %cst_6 = arith.constant 0.707106769 : f32
    %8 = vector.broadcast %cst_6 : f32 to vector<8x128xf32>
    %9 = arith.mulf %5, %8 : vector<8x128xf32>
    %10 = math.erf %9 : vector<8x128xf32>
    %cst_7 = arith.constant 1.000000e+00 : f32
    %11 = vector.broadcast %cst_7 : f32 to vector<8x128xf32>
    %12 = arith.addf %11, %10 : vector<8x128xf32>
    %13 = arith.mulf %7, %12 : vector<8x128xf32>
    %cst_8 = arith.constant dense<0.000000e+00> : vector<8xf32>
    %14 = vector.multi_reduction <add>, %13, %cst_8 [1] : vector<8x128xf32> to vector<8xf32>
    %15 = vector.shape_cast %14 : vector<8xf32> to vector<8x1xf32>
    %cst_9 = arith.constant 1.280000e+02 : f32
    %16 = vector.broadcast %cst_9 : f32 to vector<8x1xf32>
    %17 = arith.divf %15, %16 : vector<8x1xf32>
    %18 = vector.broadcast %17 : vector<8x1xf32> to vector<8x128xf32>
    %19 = arith.subf %13, %18 : vector<8x128xf32>
    %20 = arith.mulf %19, %19 : vector<8x128xf32>
    %cst_10 = arith.constant dense<0.000000e+00> : vector<8xf32>
    %21 = vector.multi_reduction <add>, %20, %cst_10 [1] : vector<8x128xf32> to vector<8xf32>
    %22 = vector.shape_cast %21 : vector<8xf32> to vector<8x1xf32>
    %cst_11 = arith.constant 1.280000e+02 : f32
    %23 = vector.broadcast %cst_11 : f32 to vector<8x1xf32>
    %24 = arith.divf %22, %23 : vector<8x1xf32>
    %cst_12 = arith.constant 9.99999996E-13 : f32
    %25 = vector.broadcast %cst_12 : f32 to vector<8x1xf32>
    %26 = arith.addf %24, %25 : vector<8x1xf32>
    %27 = math.rsqrt %26 : vector<8x1xf32>
    %28 = vector.broadcast %27 : vector<8x1xf32> to vector<8x128xf32>
    %29 = arith.mulf %19, %28 : vector<8x128xf32>
    %c0_13 = arith.constant 0 : index
    %c0_14 = arith.constant 0 : index
    %30 = vector.load %arg4[%c0_13, %c0_14] : memref<1x128xf32, #tpu.memory_space<vmem>>, vector<1x128xf32>
    %31 = vector.broadcast %30 : vector<1x128xf32> to vector<8x128xf32>
    %32 = arith.mulf %29, %31 : vector<8x128xf32>
    %c0_15 = arith.constant 0 : index
    %c0_16 = arith.constant 0 : index
    %33 = vector.load %arg5[%c0_15, %c0_16] : memref<1x128xf32, #tpu.memory_space<vmem>>, vector<1x128xf32>
    %34 = vector.broadcast %33 : vector<1x128xf32> to vector<8x128xf32>
    %35 = arith.addf %32, %34 : vector<8x128xf32>
    %c0_17 = arith.constant 0 : index
    %c0_18 = arith.constant 0 : index
    %36 = vector.load %arg6[%c0_17, %c0_18] : memref<128x768xf32, #tpu.memory_space<vmem>>, vector<128x768xf32>
    %cst_19 = arith.constant dense<0.000000e+00> : vector<8x768xf32>
    %37 = tpu.matmul %35, %36, %cst_19 {dimension_numbers = #tpu.dot_dimension_numbers<[1], [0], [0], [1], [0, 0, 1, 1], [], []>} : vector<8x128xf32>, vector<128x768xf32>, vector<8x768xf32> -> vector<8x768xf32>
    %c0_20 = arith.constant 0 : index
    %c0_21 = arith.constant 0 : index
    %38 = vector.load %arg7[%c0_20, %c0_21] : memref<1x768xf32, #tpu.memory_space<vmem>>, vector<1x768xf32>
    %39 = vector.broadcast %38 : vector<1x768xf32> to vector<8x768xf32>
    %40 = arith.addf %37, %39 : vector<8x768xf32>
    %c0_22 = arith.constant 0 : index
    %c0_23 = arith.constant 0 : index
    %41 = vector.load %arg8[%c0_22, %c0_23] : memref<8x768xf32, #tpu.memory_space<vmem>>, vector<8x768xf32>
    tpu.vector_store %arg8[%c0_22, %c0_23], %40 {strides = array<i32>} : memref<8x768xf32, #tpu.memory_space<vmem>>, vector<8x768xf32>,
    return
  }
  func.func @transform_0(%arg0: i32) -> (i32, i32) {
    %c0_i32 = arith.constant 0 : i32
    %c0_i32_0 = arith.constant 0 : i32
    return %arg0, %c0_i32 : i32, i32
  }
  func.func @transform_1(%arg0: i32) -> (i32, i32) {
    %c0_i32 = arith.constant 0 : i32
    %c0_i32_0 = arith.constant 0 : i32
    %c0_i32_1 = arith.constant 0 : i32
    return %c0_i32, %c0_i32_0 : i32, i32
  }
  func.func @transform_2(%arg0: i32) -> (i32, i32) {
    %c0_i32 = arith.constant 0 : i32
    %c0_i32_0 = arith.constant 0 : i32
    %c0_i32_1 = arith.constant 0 : i32
    return %c0_i32, %c0_i32_0 : i32, i32
  }
  func.func @transform_3(%arg0: i32) -> (i32, i32) {
    %c0_i32 = arith.constant 0 : i32
    %c0_i32_0 = arith.constant 0 : i32
    %c0_i32_1 = arith.constant 0 : i32
    return %c0_i32, %c0_i32_0 : i32, i32
  }
  func.func @transform_4(%arg0: i32) -> (i32, i32) {
    %c0_i32 = arith.constant 0 : i32
    %c0_i32_0 = arith.constant 0 : i32
    %c0_i32_1 = arith.constant 0 : i32
    return %c0_i32, %c0_i32_0 : i32, i32
  }
  func.func @transform_5(%arg0: i32) -> (i32, i32) {
    %c0_i32 = arith.constant 0 : i32
    %c0_i32_0 = arith.constant 0 : i32
    %c0_i32_1 = arith.constant 0 : i32
    return %c0_i32, %c0_i32_0 : i32, i32
  }
  func.func @transform_6(%arg0: i32) -> (i32, i32) {
    %c0_i32 = arith.constant 0 : i32
    %c0_i32_0 = arith.constant 0 : i32
    %c0_i32_1 = arith.constant 0 : i32
    return %c0_i32, %c0_i32_0 : i32, i32
  }
  func.func @transform_7(%arg0: i32) -> (i32, i32) {
    %c0_i32 = arith.constant 0 : i32
    %c0_i32_0 = arith.constant 0 : i32
    return %arg0, %c0_i32 : i32, i32
  }
}

</mosaic_0001>

<llo_original>
// kernel: tpu_custom_call.1
$region0: #{tpu_custom_call.1}
  #allocation0 [shape = 'u32[]', space=smem, size = 0x4, offset = 0x4, fixed_abs, tag = 'smem constant byte address 0x4 - core index']
  #allocation1 [shape = 'u32[144,128]{1,0:T(1,128)}', space=vmem, size = 0x12000, scoped, tag = 'internal scratch']
  %s0 = inlined_call_operand.hbm [shape: f32[16,128], index: 0, kind: input, shape index: {}]
  %s1 = inlined_call_operand.hbm [shape: f32[128,128], index: 1, kind: input, shape index: {}]
  %s2 = inlined_call_operand.vmem [shape: f32[1,128], index: 2, kind: input, shape index: {}]
  %s3 = inlined_call_operand.vmem [shape: f32[1,128], index: 3, kind: input, shape index: {}]
  %s4 = inlined_call_operand.vmem [shape: f32[1,128], index: 4, kind: input, shape index: {}]
  %s5 = inlined_call_operand.hbm [shape: f32[128,768], index: 5, kind: input, shape index: {}]
  %s6 = inlined_call_operand.vmem [shape: f32[1,768], index: 6, kind: input, shape index: {}]
  %s7 = inlined_call_operand.hbm [shape: f32[16,768], index: 7, kind: output, shape index: {}]
  %s8 = sld [smem:[#allocation0]]
  $region73: #{tpu_custom_call.1} parent=0
    _
  %s10 = ssub.s32 1, %s8
  %s11 = scalar_select 0, %s10, %s8
  $region1: #{tpu_custom_call.1} parent=0
    #allocation2 [shape = 'u8[8192]{0}', space=vmem, size = 0x2000, scoped, tag = 'input window, operand 0']
    #allocation3 [shape = 's32[2]{0}', space=sflag, size = 0x8, scoped, tag = 'scoped memory for tpu_custom_call.1']
    #allocation4 [shape = 's32[2]{0}', space=sflag, size = 0x8, scoped, tag = 'scoped memory for tpu_custom_call.1']
    #allocation5 [shape = 'u8[65536]{0}', space=vmem, size = 0x10000, scoped, tag = 'input window, operand 1, single buffered']
    #allocation6 [shape = 's32[1]{0}', space=sflag, size = 0x4, scoped, tag = 'scoped memory for tpu_custom_call.1']
    #allocation7 [shape = 'u8[393216]{0}', space=vmem, size = 0x60000, scoped, tag = 'input window, operand 5, single buffered']
    #allocation8 [shape = 'u8[49152]{0}', space=vmem, size = 0xc000, scoped, tag = 'output window, operand 0']
    %12 = vsyncpa [#allocation3], 0
    %s13 = scalar_lea.sflag [#allocation3], 1
    %14 = vsyncpa %s13, 0
    %15 = vsyncpa [#allocation6], 0
    %16 = vsyncpa [#allocation4], 0
    %s17 = scalar_lea.sflag [#allocation4], 1
    %18 = vsyncpa %s17, 0
    loop: start=0, step=1, limit=4
    $region2: #{tpu_custom_call.1} parent=1 // loop_pre_header
      _
    $region3: #{tpu_custom_call.1} parent=1 // loop_header
      %s20 = sphi 0, %s24
      %p21 = scmp.ge.s32.totalorder %s20, 4
      %s30 = sphi 0, %s32
      %s33 = sphi 0, %s30
      %s34 = sphi 0, %s33
      %s50 = sphi 0, %s34
      %s54 = sphi 0, %s54
      %s56 = sphi 0, %s54
      %s57 = sphi 0, %s56
      %s71 = sphi 0, %s57
      %s75 = sphi 0, %s75
      %s77 = sphi 0, %s75
      %s78 = sphi 0, %s77
      %s92 = sphi 0, %s78
      %s96 = sphi 0, %s96
      %s98 = sphi 0, %s96
      %s99 = sphi 0, %s98
      %s113 = sphi 0, %s99
      %s117 = sphi 0, %s117
      %s119 = sphi 0, %s117
      %s120 = sphi 0, %s119
      %s134 = sphi 0, %s120
      %s138 = sphi 0, %s138
      %s140 = sphi 0, %s138
      %s141 = sphi 0, %s140
      %s155 = sphi 0, %s141
      %s159 = sphi 0, %s159
      %s161 = sphi 0, %s159
      %s162 = sphi 0, %s161
      %s176 = sphi 0, %s162
      %s182 = sphi 0, %s184
      %s185 = sphi 0, %s182
      %s186 = sphi 0, %s185
      %s202 = sphi 0, %s186
    $region4: #{tpu_custom_call.1} parent=1 // loop_header_branch
      %23 = sbr.rel (%p21) target = $region8
    $region5: #{tpu_custom_call.1} parent=1 // loop_body
      %s25 = ssub.s32 %s20, 1
      %s26 = ssub.s32 %s20, 2
      %s27 = sadd.s32 %s20, 1
      %s28 = ssub.s32 %s20, %s27
      %p29 = scmp.eq.s32.totalorder %s28, 0
      %s31 = sadd.s32 %s30, 1
      %s32 = scalar_select %p29, %s30, %s31
      %p35 = pneg %p29
      %p36 = scmp.eq.s32.totalorder %s20, 1
      %p37 = por %p35, %p36
      %p38 = scmp.ne.s32.totalorder %s30, %s33
      %p39 = scmp.eq.s32.totalorder %s20, 0
      %p40 = por %p38, %p39
      %p41 = scmp.ne.s32.totalorder %s30, %s33
      %p42 = scmp.eq.s32.totalorder %s25, 1
      %p43 = por %p41, %p42
      %p44 = scmp.ne.s32.totalorder %s33, %s34
      %p45 = scmp.eq.s32.totalorder %s25, 0
      %p46 = por %p44, %p45
      %p47 = scmp.ne.s32.totalorder %s33, %s34
      %p48 = scmp.eq.s32.totalorder %s26, 1
      %p49 = por %p47, %p48
      %p51 = scmp.ne.s32.totalorder %s34, %s50
      %p52 = scmp.eq.s32.totalorder %s26, 0
      %p53 = por %p51, %p52
      %s55 = sadd.s32 %s54, 1
      %p58 = scmp.eq.s32.totalorder %s20, 1
      %p59 = scmp.ne.s32.totalorder %s54, %s56
      %p60 = scmp.eq.s32.totalorder %s20, 0
      %p61 = por %p59, %p60
      %p62 = scmp.ne.s32.totalorder %s54, %s56
      %p63 = scmp.eq.s32.totalorder %s25, 1
      %p64 = por %p62, %p63
      %p65 = scmp.ne.s32.totalorder %s56, %s57
      %p66 = scmp.eq.s32.totalorder %s25, 0
      %p67 = por %p65, %p66
      %p68 = scmp.ne.s32.totalorder %s56, %s57
      %p69 = scmp.eq.s32.totalorder %s26, 1
      %p70 = por %p68, %p69
      %p72 = scmp.ne.s32.totalorder %s57, %s71
      %p73 = scmp.eq.s32.totalorder %s26, 0
      %p74 = por %p72, %p73
      %s76 = sadd.s32 %s75, 1
      %p79 = scmp.eq.s32.totalorder %s20, 1
      %p80 = scmp.ne.s32.totalorder %s75, %s77
      %p81 = scmp.eq.s32.totalorder %s20, 0
      %p82 = por %p80, %p81
      %p83 = scmp.ne.s32.totalorder %s75, %s77
      %p84 = scmp.eq.s32.totalorder %s25, 1
      %p85 = por %p83, %p84
      %p86 = scmp.ne.s32.totalorder %s77, %s78
      %p87 = scmp.eq.s32.totalorder %s25, 0
      %p88 = por %p86, %p87
      %p89 = scmp.ne.s32.totalorder %s77, %s78
      %p90 = scmp.eq.s32.totalorder %s26, 1
      %p91 = por %p89, %p90
      %p93 = scmp.ne.s32.totalorder %s78, %s92
      %p94 = scmp.eq.s32.totalorder %s26, 0
      %p95 = por %p93, %p94
      %s97 = sadd.s32 %s96, 1
      %p100 = scmp.eq.s32.totalorder %s20, 1
      %p101 = scmp.ne.s32.totalorder %s96, %s98
      %p102 = scmp.eq.s32.totalorder %s20, 0
      %p103 = por %p101, %p102
      %p104 = scmp.ne.s32.totalorder %s96, %s98
      %p105 = scmp.eq.s32.totalorder %s25, 1
      %p106 = por %p104, %p105
      %p107 = scmp.ne.s32.totalorder %s98, %s99
      %p108 = scmp.eq.s32.totalorder %s25, 0
      %p109 = por %p107, %p108
      %p110 = scmp.ne.s32.totalorder %s98, %s99
      %p111 = scmp.eq.s32.totalorder %s26, 1
      %p112 = por %p110, %p111
      %p114 = scmp.ne.s32.totalorder %s99, %s113
      %p115 = scmp.eq.s32.totalorder %s26, 0
      %p116 = por %p114, %p115
      %s118 = sadd.s32 %s117, 1
      %p121 = scmp.eq.s32.totalorder %s20, 1
      %p122 = scmp.ne.s32.totalorder %s117, %s119
      %p123 = scmp.eq.s32.totalorder %s20, 0
      %p124 = por %p122, %p123
      %p125 = scmp.ne.s32.totalorder %s117, %s119
      %p126 = scmp.eq.s32.totalorder %s25, 1
      %p127 = por %p125, %p126
      %p128 = scmp.ne.s32.totalorder %s119, %s120
      %p129 = scmp.eq.s32.totalorder %s25, 0
      %p130 = por %p128, %p129
      %p131 = scmp.ne.s32.totalorder %s119, %s120
      %p132 = scmp.eq.s32.totalorder %s26, 1
      %p133 = por %p131, %p132
      %p135 = scmp.ne.s32.totalorder %s120, %s134
      %p136 = scmp.eq.s32.totalorder %s26, 0
      %p137 = por %p135, %p136
      %s139 = sadd.s32 %s138, 1
      %p142 = scmp.eq.s32.totalorder %s20, 1
      %p143 = scmp.ne.s32.totalorder %s138, %s140
      %p144 = scmp.eq.s32.totalorder %s20, 0
      %p145 = por %p143, %p144
      %p146 = scmp.ne.s32.totalorder %s138, %s140
      %p147 = scmp.eq.s32.totalorder %s25, 1
      %p148 = por %p146, %p147
      %p149 = scmp.ne.s32.totalorder %s140, %s141
      %p150 = scmp.eq.s32.totalorder %s25, 0
      %p151 = por %p149, %p150
      %p152 = scmp.ne.s32.totalorder %s140, %s141
      %p153 = scmp.eq.s32.totalorder %s26, 1
      %p154 = por %p152, %p153
      %p156 = scmp.ne.s32.totalorder %s141, %s155
      %p157 = scmp.eq.s32.totalorder %s26, 0
      %p158 = por %p156, %p157
      %s160 = sadd.s32 %s159, 1
      %p163 = scmp.eq.s32.totalorder %s20, 1
      %p164 = scmp.ne.s32.totalorder %s159, %s161
      %p165 = scmp.eq.s32.totalorder %s20, 0
      %p166 = por %p164, %p165
      %p167 = scmp.ne.s32.totalorder %s159, %s161
      %p168 = scmp.eq.s32.totalorder %s25, 1
      %p169 = por %p167, %p168
      %p170 = scmp.ne.s32.totalorder %s161, %s162
      %p171 = scmp.eq.s32.totalorder %s25, 0
      %p172 = por %p170, %p171
      %p173 = scmp.ne.s32.totalorder %s161, %s162
      %p174 = scmp.eq.s32.totalorder %s26, 1
      %p175 = por %p173, %p174
      %p177 = scmp.ne.s32.totalorder %s162, %s176
      %p178 = scmp.eq.s32.totalorder %s26, 0
      %p179 = por %p177, %p178
      %s180 = ssub.s32 %s20, %s27
      %p181 = scmp.eq.s32.totalorder %s180, 0
      %s183 = sadd.s32 %s182, 1
      %s184 = scalar_select %p181, %s182, %s183
      %p187 = pneg %p181
      %p188 = scmp.eq.s32.totalorder %s20, 1
      %p189 = por %p187, %p188
      %p190 = scmp.ne.s32.totalorder %s182, %s185
      %p191 = scmp.eq.s32.totalorder %s20, 0
      %p192 = por %p190, %p191
      %p193 = scmp.ne.s32.totalorder %s182, %s185
      %p194 = scmp.eq.s32.totalorder %s25, 1
      %p195 = por %p193, %p194
      %p196 = scmp.ne.s32.totalorder %s185, %s186
      %p197 = scmp.eq.s32.totalorder %s25, 0
      %p198 = por %p196, %p197
      %p199 = scmp.ne.s32.totalorder %s185, %s186
      %p200 = scmp.eq.s32.totalorder %s26, 1
      %p201 = por %p199, %p200
      %p203 = scmp.ne.s32.totalorder %s186, %s202
      %p204 = scmp.eq.s32.totalorder %s26, 0
      %p205 = por %p203, %p204
      %p206 = scmp.le.s32.totalorder 1, %s20
      %p207 = scmp.lt.s32.totalorder %s20, 3
      %p208 = pnand %p206, %p207
      %p209 = pneg %p208
      // Predicated region
      $region9: #{tpu_custom_call.1} parent=5 // pred_check
        _
      $region10: #{tpu_custom_call.1} parent=5 // pred_check_branch
        %211 = sbr.rel (%p208) target = $region12
      $region11: #{tpu_custom_call.1} parent=5 // pred_region
        %s212 = ssub.s32 %s20, 1
        // Predicated region
        $region13: #{tpu_custom_call.1} parent=11 // pred_check
          %p213 = pneg %p67
        $region14: #{tpu_custom_call.1} parent=11 // pred_check_branch
          %215 = sbr.rel (%p213) target = $region16
        $region15: #{tpu_custom_call.1} parent=11 // pred_region
          %s217 = ssub.s32 2048, 2048
          %218 = vsyncadd [#allocation6], %s217
          %s219 = sshll.u32 [#allocation5], 4
          %s220 = int_to_ptr.vmem [resolvable:$true] %s219
          %225 = dma.hbm_to_vmem [thread:$0]  %s1, 2048, %s220, [#allocation6], 128, 128, 8
        $region16: #{tpu_custom_call.1} parent=11 // pred_fallthru
          _
        // Predicated region
        $region17: #{tpu_custom_call.1} parent=11 // pred_check
          %p226 = pneg %p88
        $region18: #{tpu_custom_call.1} parent=11 // pred_check_branch
          %228 = sbr.rel (%p226) target = $region20
        $region19: #{tpu_custom_call.1} parent=11 // pred_region
          _
        $region20: #{tpu_custom_call.1} parent=11 // pred_fallthru
          _
        // Predicated region
        $region21: #{tpu_custom_call.1} parent=11 // pred_check
          %p229 = pneg %p109
        $region22: #{tpu_custom_call.1} parent=11 // pred_check_branch
          %231 = sbr.rel (%p229) target = $region24
        $region23: #{tpu_custom_call.1} parent=11 // pred_region
          _
        $region24: #{tpu_custom_call.1} parent=11 // pred_fallthru
          _
        // Predicated region
        $region25: #{tpu_custom_call.1} parent=11 // pred_check
          %p232 = pneg %p130
        $region26: #{tpu_custom_call.1} parent=11 // pred_check_branch
          %234 = sbr.rel (%p232) target = $region28
        $region27: #{tpu_custom_call.1} parent=11 // pred_region
          _
        $region28: #{tpu_custom_call.1} parent=11 // pred_fallthru
          _
        // Predicated region
        $region29: #{tpu_custom_call.1} parent=11 // pred_check
          %p235 = pneg %p151
        $region30: #{tpu_custom_call.1} parent=11 // pred_check_branch
          %237 = sbr.rel (%p235) target = $region32
        $region31: #{tpu_custom_call.1} parent=11 // pred_region
          %s239 = ssub.s32 12288, 12288
          %240 = vsyncadd [#allocation6], %s239
          %s241 = sshll.u32 [#allocation7], 4
          %s242 = int_to_ptr.vmem [resolvable:$true] %s241
          %247 = dma.hbm_to_vmem [thread:$0]  %s5, 12288, %s242, [#allocation6], 768, 768, 48
        $region32: #{tpu_custom_call.1} parent=11 // pred_fallthru
          _
        // Predicated region
        $region33: #{tpu_custom_call.1} parent=11 // pred_check
          %p248 = pneg %p172
        $region34: #{tpu_custom_call.1} parent=11 // pred_check_branch
          %250 = sbr.rel (%p248) target = $region36
        $region35: #{tpu_custom_call.1} parent=11 // pred_region
          _
        $region36: #{tpu_custom_call.1} parent=11 // pred_fallthru
          _
      $region12: #{tpu_custom_call.1} parent=5 // pred_fallthru
        _
      %p251 = scmp.lt.s32.totalorder %s20, 2
      // Predicated region
      $region37: #{tpu_custom_call.1} parent=5 // pred_check
        %p252 = pneg %p251
      $region38: #{tpu_custom_call.1} parent=5 // pred_check_branch
        %254 = sbr.rel (%p252) target = $region40
      $region39: #{tpu_custom_call.1} parent=5 // pred_region
        // Predicated region
        $region41: #{tpu_custom_call.1} parent=39 // pred_check
          %p255 = pneg %p40
        $region42: #{tpu_custom_call.1} parent=39 // pred_check_branch
          %257 = sbr.rel (%p255) target = $region44
        $region43: #{tpu_custom_call.1} parent=39 // pred_region
          %s258 = sand.u32 %s30, 1
          %s259 = scalar_lea.sflag [#allocation3], %s258
          %s260 = sand.u32 %s30, 1
          %s261 = smul.addr %s260, 8
          %s262 = scalar_lea.vmem [#allocation2], %s261
          %s264 = ssub.s32 128, 128
          %265 = vsyncadd %s259, %s264
          %s266 = smul.addr %s20, 128
          %s267 = scalar_lea.hbm %s0, %s266
          %s269 = sshll.u32 %s262, 4
          %s270 = int_to_ptr.vmem [resolvable:$true] %s269
          %272 = dma.hbm_to_vmem [thread:$0]  %s267, 128, %s270, %s259
        $region44: #{tpu_custom_call.1} parent=39 // pred_fallthru
          _
      $region40: #{tpu_custom_call.1} parent=5 // pred_fallthru
        _
      %p273 = scmp.le.s32.totalorder 1, %s20
      %p274 = scmp.lt.s32.totalorder %s20, 3
      %p275 = pnand %p273, %p274
      %p276 = pneg %p275
      // Predicated region
      $region45: #{tpu_custom_call.1} parent=5 // pred_check
        _
      $region46: #{tpu_custom_call.1} parent=5 // pred_check_branch
        %278 = sbr.rel (%p275) target = $region48
      $region47: #{tpu_custom_call.1} parent=5 // pred_region
        %s279 = ssub.s32 %s20, 1
        %s280 = sand.u32 %s33, 1
        %s281 = scalar_lea.sflag [#allocation3], %s280
        %s282 = sand.u32 %s33, 1
        %s283 = smul.addr %s282, 8
        %s284 = scalar_lea.vmem [#allocation2], %s283
        // Predicated region
        $region49: #{tpu_custom_call.1} parent=47 // pred_check
          %p285 = pneg %p46
        $region50: #{tpu_custom_call.1} parent=47 // pred_check_branch
          %287 = sbr.rel (%p285) target = $region52
        $region51: #{tpu_custom_call.1} parent=47 // pred_region
          %288 = dma.done %s281, 128
        $region52: #{tpu_custom_call.1} parent=47 // pred_fallthru
          _
        // Predicated region
        $region53: #{tpu_custom_call.1} parent=47 // pred_check
          %p289 = pneg %p67
        $region54: #{tpu_custom_call.1} parent=47 // pred_check_branch
          %291 = sbr.rel (%p289) target = $region56
        $region55: #{tpu_custom_call.1} parent=47 // pred_region
          %292 = dma.done [#allocation6], 2048
        $region56: #{tpu_custom_call.1} parent=47 // pred_fallthru
          _
        // Predicated region
        $region57: #{tpu_custom_call.1} parent=47 // pred_check
          %p293 = pneg %p151
        $region58: #{tpu_custom_call.1} parent=47 // pred_check_branch
          %295 = sbr.rel (%p293) target = $region60
        $region59: #{tpu_custom_call.1} parent=47 // pred_region
          %296 = dma.done [#allocation6], 12288
        $region60: #{tpu_custom_call.1} parent=47 // pred_fallthru
          _
        %s297 = sand.u32 %s33, 1
        %s298 = scalar_lea.sflag [#allocation3], %s297
        %s299 = sand.u32 %s33, 1
        %s300 = smul.addr %s299, 8
        %s301 = scalar_lea.vmem [#allocation2], %s300
        %p302 = pneg %p46
        %p303 = pneg %p43
        %p304 = pneg %p67
        %p305 = pneg %p64
        %p306 = pneg %p88
        %p307 = pneg %p85
        %p308 = pneg %p109
        %p309 = pneg %p106
        %p310 = pneg %p130
        %p311 = pneg %p127
        %p312 = pneg %p151
        %p313 = pneg %p148
        %p314 = pneg %p172
        %p315 = pneg %p169
        %p316 = pneg %p198
        %p317 = pneg %p195
        %s318 = sand.u32 %s185, 1
        %s319 = scalar_lea.sflag [#allocation4], %s318
        %s320 = sand.u32 %s185, 1
        %s321 = smul.addr %s320, 48
        %s322 = scalar_lea.vmem [#allocation8], %s321
        %v323 = vld [vmem:[%s284] sm:$0xff]
        %v324 = vld [vmem:[#allocation5] sm:$0xff]
        %v325 = vld [vmem:[#allocation5 + $0x8] sm:$0xff]
        %v326 = vld [vmem:[#allocation5 + $0x10] sm:$0xff]
        %v327 = vld [vmem:[#allocation5 + $0x18] sm:$0xff]
        %v328 = vld [vmem:[#allocation5 + $0x20] sm:$0xff]
        %v329 = vld [vmem:[#allocation5 + $0x28] sm:$0xff]
        %v330 = vld [vmem:[#allocation5 + $0x30] sm:$0xff]
        %v331 = vld [vmem:[#allocation5 + $0x38] sm:$0xff]
        %v332 = vld [vmem:[#allocation5 + $0x40] sm:$0xff]
        %v333 = vld [vmem:[#allocation5 + $0x48] sm:$0xff]
        %v334 = vld [vmem:[#allocation5 + $0x50] sm:$0xff]
        %v335 = vld [vmem:[#allocation5 + $0x58] sm:$0xff]
        %v336 = vld [vmem:[#allocation5 + $0x60] sm:$0xff]
        %v337 = vld [vmem:[#allocation5 + $0x68] sm:$0xff]
        %v338 = vld [vmem:[#allocation5 + $0x70] sm:$0xff]
        %v339 = vld [vmem:[#allocation5 + $0x78] sm:$0xff]
        %v340 = vld [vmem:[%s2] sm:$0x1]
        %v342 = vlaneseq
        %v343 = vshrl.u32 %v342, 7
        %v344 = vsub.s32 0, %v343
        %v345 = vrot.slane %v340, %v344
        %347 = vmatprep.subr.mxu0 0.0
        %348 = vmatpush1.msra.mxu0 %v339
        %349 = vmatprep.subr.mxu0 0.0
        %350 = vmatpush1.msra.mxu0 %v338
        %351 = vmatprep.subr.mxu0 0.0
        %352 = vmatpush1.msra.mxu0 %v337
        %353 = vmatprep.subr.mxu0 0.0
        %354 = vmatpush1.msra.mxu0 %v336
        %355 = vmatprep.subr.mxu0 0.0
        %356 = vmatpush1.msra.mxu0 %v335
        %357 = vmatprep.subr.mxu0 0.0
        %358 = vmatpush1.msra.mxu0 %v334
        %359 = vmatprep.subr.mxu0 0.0
        %360 = vmatpush1.msra.mxu0 %v333
        %361 = vmatprep.subr.mxu0 0.0
        %362 = vmatpush1.msra.mxu0 %v332
        %363 = vmatprep.subr.mxu0 0.0
        %364 = vmatpush1.msra.mxu0 %v331
        %365 = vmatprep.subr.mxu0 0.0
        %366 = vmatpush1.msra.mxu0 %v330
        %367 = vmatprep.subr.mxu0 0.0
        %368 = vmatpush1.msra.mxu0 %v329
        %369 = vmatprep.subr.mxu0 0.0
        %370 = vmatpush1.msra.mxu0 %v328
        %371 = vmatprep.subr.mxu0 0.0
        %372 = vmatpush1.msra.mxu0 %v327
        %373 = vmatprep.subr.mxu0 0.0
        %374 = vmatpush1.msra.mxu0 %v326
        %375 = vmatprep.subr.mxu0 0.0
        %376 = vmatpush1.msra.mxu0 %v325
        %377 = vmatprep.subr.mxu0 0.0
        %378 = vmatpush1.msra.mxu0 %v324
        %379 = vmatprep.subr.mxu0 0.0
        %380 = vmatpush2.msra.mxu0 0.0
        %381 = vmatprep.subr.mxu0 0.0
        %382 = vmatpush2.msra.mxu0 0.0
        %383 = vmatprep.subr.mxu0 0.0
        %384 = vmatpush2.msra.mxu0 0.0
        %385 = vmatprep.subr.mxu0 0.0
        %386 = vmatpush2.msra.mxu0 0.0
        %387 = vmatprep.subr.mxu0 0.0
        %388 = vmatpush2.msra.mxu0 0.0
        %389 = vmatprep.subr.mxu0 0.0
        %390 = vmatpush2.msra.mxu0 0.0
        %391 = vmatprep.subr.mxu0 0.0
        %392 = vmatpush2.msra.mxu0 0.0
        %393 = vmatprep.subr.mxu0 0.0
        %394 = vmatpush2.msra.mxu0 0.0
        %395 = vmatprep.subr.mxu0 0.0
        %396 = vmatpush2.msra.mxu0 0.0
        %397 = vmatprep.subr.mxu0 0.0
        %398 = vmatpush2.msra.mxu0 0.0
        %399 = vmatprep.subr.mxu0 0.0
        %400 = vmatpush2.msra.mxu0 0.0
        %401 = vmatprep.subr.mxu0 0.0
        %402 = vmatpush2.msra.mxu0 0.0
        %403 = vmatprep.subr.mxu0 0.0
        %404 = vmatpush2.msra.mxu0 0.0
        %405 = vmatprep.subr.mxu0 0.0
        %406 = vmatpush2.msra.mxu0 0.0
        %407 = vmatprep.subr.mxu0 0.0
        %408 = vmatpush2.msra.mxu0 0.0
        %409 = vmatprep.subr.mxu0 0.0
        %410 = vmatpush2.msra.mxu0 0.0
        %411 = vmatprep.mubr.f32.mxu0 0.0
        %412 = vmatmul.mubr.f32.gmra.mxu0 %v323
        %v413 = vpop.f32.mrf.mxu0
        %v414 = vadd.f32 %v345, %v413
        %v415 = vpop.f32.mrf.mxu0
        %416 = vdwg.mxu0
        %v417 = vmul.f32 %v414, 0.5
        %v418 = vmul.f32 %v414, 0.70710677
        %v419 = verf.f32.pop %v418
        %v420 = vadd.f32 %v419, 1.0
        %v421 = vmul.f32 %v417, %v420
        %422 = vadd.xlane.f32.xlu0 %v421
        %v423 = vpop.xlane.xlu0 %422
        %v424 = vrcp.pop 128.0
        %v425 = vmul.f32 %v423, %v424
        %v426 = vsub.f32 %v421, %v425
        %v427 = vmul.f32 %v426, %v426
        %428 = vadd.xlane.f32.xlu0 %v427
        %v429 = vpop.xlane.xlu0 %428
        %v430 = vmul.f32 %v429, %v424
        %v431 = vadd.f32 %v430, 1e-12
        %v432 = vrsqrt.pop %v431
        %v433 = vmul.f32 %v426, %v432
        %v434 = vld [vmem:[%s3] sm:$0x1]
        %v436 = vlaneseq
        %v437 = vshrl.u32 %v436, 7
        %v438 = vsub.s32 0, %v437
        %v439 = vrot.slane %v434, %v438
        %v441 = vmul.f32 %v433, %v439
        %v442 = vld [vmem:[%s4] sm:$0x1]
        %v444 = vlaneseq
        %v445 = vshrl.u32 %v444, 7
        %v446 = vsub.s32 0, %v445
        %v447 = vrot.slane %v442, %v446
        %v449 = vadd.f32 %v441, %v447
        %v450 = vld [vmem:[#allocation7] sm:$0xff]
        %v451 = vld [vmem:[#allocation7 + $0x8] sm:$0xff]
        %v452 = vld [vmem:[#allocation7 + $0x10] sm:$0xff]
        %v453 = vld [vmem:[#allocation7 + $0x18] sm:$0xff]
        %v454 = vld [vmem:[#allocation7 + $0x20] sm:$0xff]
        %v455 = vld [vmem:[#allocation7 + $0x28] sm:$0xff]
        %v456 = vld [vmem:[#allocation7 + $0x30] sm:$0xff]
        %v457 = vld [vmem:[#allocation7 + $0x38] sm:$0xff]
        %v458 = vld [vmem:[#allocation7 + $0x40] sm:$0xff]
        %v459 = vld [vmem:[#allocation7 + $0x48] sm:$0xff]
        %v460 = vld [vmem:[#allocation7 + $0x50] sm:$0xff]
        %v461 = vld [vmem:[#allocation7 + $0x58] sm:$0xff]
        %v462 = vld [vmem:[#allocation7 + $0x60] sm:$0xff]
        %v463 = vld [vmem:[#allocation7 + $0x68] sm:$0xff]
        %v464 = vld [vmem:[#allocation7 + $0x70] sm:$0xff]
        %v465 = vld [vmem:[#allocation7 + $0x78] sm:$0xff]
        %v466 = vld [vmem:[#allocation7 + $0x80] sm:$0xff]
        %v467 = vld [vmem:[#allocation7 + $0x88] sm:$0xff]
        %v468 = vld [vmem:[#allocation7 + $0x90] sm:$0xff]
        %v469 = vld [vmem:[#allocation7 + $0x98] sm:$0xff]
        %v470 = vld [vmem:[#allocation7 + $0xa0] sm:$0xff]
        %v471 = vld [vmem:[#allocation7 + $0xa8] sm:$0xff]
        %v472 = vld [vmem:[#allocation7 + $0xb0] sm:$0xff]
        %v473 = vld [vmem:[#allocation7 + $0xb8] sm:$0xff]
        %v474 = vld [vmem:[#allocation7 + $0xc0] sm:$0xff]
        %v475 = vld [vmem:[#allocation7 + $0xc8] sm:$0xff]
        %v476 = vld [vmem:[#allocation7 + $0xd0] sm:$0xff]
        %v477 = vld [vmem:[#allocation7 + $0xd8] sm:$0xff]
        %v478 = vld [vmem:[#allocation7 + $0xe0] sm:$0xff]
        %v479 = vld [vmem:[#allocation7 + $0xe8] sm:$0xff]
        %v480 = vld [vmem:[#allocation7 + $0xf0] sm:$0xff]
        %v481 = vld [vmem:[#allocation7 + $0xf8] sm:$0xff]
        %v482 = vld [vmem:[#allocation7 + $0x100] sm:$0xff]
        %v483 = vld [vmem:[#allocation7 + $0x108] sm:$0xff]
        %v484 = vld [vmem:[#allocation7 + $0x110] sm:$0xff]
        %v485 = vld [vmem:[#allocation7 + $0x118] sm:$0xff]
        %v486 = vld [vmem:[#allocation7 + $0x120] sm:$0xff]
        %v487 = vld [vmem:[#allocation7 + $0x128] sm:$0xff]
        %v488 = vld [vmem:[#allocation7 + $0x130] sm:$0xff]
        %v489 = vld [vmem:[#allocation7 + $0x138] sm:$0xff]
        %v490 = vld [vmem:[#allocation7 + $0x140] sm:$0xff]
        %v491 = vld [vmem:[#allocation7 + $0x148] sm:$0xff]
        %v492 = vld [vmem:[#allocation7 + $0x150] sm:$0xff]
        %v493 = vld [vmem:[#allocation7 + $0x158] sm:$0xff]
        %v494 = vld [vmem:[#allocation7 + $0x160] sm:$0xff]
        %v495 = vld [vmem:[#allocation7 + $0x168] sm:$0xff]
        %v496 = vld [vmem:[#allocation7 + $0x170] sm:$0xff]
        %v497 = vld [vmem:[#allocation7 + $0x178] sm:$0xff]
        %v498 = vld [vmem:[#allocation7 + $0x180] sm:$0xff]
        %v499 = vld [vmem:[#allocation7 + $0x188] sm:$0xff]
        %v500 = vld [vmem:[#allocation7 + $0x190] sm:$0xff]
        %v501 = vld [vmem:[#allocation7 + $0x198] sm:$0xff]
        %v502 = vld [vmem:[#allocation7 + $0x1a0] sm:$0xff]
        %v503 = vld [vmem:[#allocation7 + $0x1a8] sm:$0xff]
        %v504 = vld [vmem:[#allocation7 + $0x1b0] sm:$0xff]
        %v505 = vld [vmem:[#allocation7 + $0x1b8] sm:$0xff]
        %v506 = vld [vmem:[#allocation7 + $0x1c0] sm:$0xff]
        %v507 = vld [vmem:[#allocation7 + $0x1c8] sm:$0xff]
        %v508 = vld [vmem:[#allocation7 + $0x1d0] sm:$0xff]
        %v509 = vld [vmem:[#allocation7 + $0x1d8] sm:$0xff]
        %v510 = vld [vmem:[#allocation7 + $0x1e0] sm:$0xff]
        %v511 = vld [vmem:[#allocation7 + $0x1e8] sm:$0xff]
        %v512 = vld [vmem:[#allocation7 + $0x1f0] sm:$0xff]
        %v513 = vld [vmem:[#allocation7 + $0x1f8] sm:$0xff]
        %v514 = vld [vmem:[#allocation7 + $0x200] sm:$0xff]
        %v515 = vld [vmem:[#allocation7 + $0x208] sm:$0xff]
        %v516 = vld [vmem:[#allocation7 + $0x210] sm:$0xff]
        %v517 = vld [vmem:[#allocation7 + $0x218] sm:$0xff]
        %v518 = vld [vmem:[#allocation7 + $0x220] sm:$0xff]
        %v519 = vld [vmem:[#allocation7 + $0x228] sm:$0xff]
        %v520 = vld [vmem:[#allocation7 + $0x230] sm:$0xff]
        %v521 = vld [vmem:[#allocation7 + $0x238] sm:$0xff]
        %v522 = vld [vmem:[#allocation7 + $0x240] sm:$0xff]
        %v523 = vld [vmem:[#allocation7 + $0x248] sm:$0xff]
        %v524 = vld [vmem:[#allocation7 + $0x250] sm:$0xff]
        %v525 = vld [vmem:[#allocation7 + $0x258] sm:$0xff]
        %v526 = vld [vmem:[#allocation7 + $0x260] sm:$0xff]
        %v527 = vld [vmem:[#allocation7 + $0x268] sm:$0xff]
        %v528 = vld [vmem:[#allocation7 + $0x270] sm:$0xff]
        %v529 = vld [vmem:[#allocation7 + $0x278] sm:$0xff]
        %v530 = vld [vmem:[#allocation7 + $0x280] sm:$0xff]
        %v531 = vld [vmem:[#allocation7 + $0x288] sm:$0xff]
        %v532 = vld [vmem:[#allocation7 + $0x290] sm:$0xff]
        %v533 = vld [vmem:[#allocation7 + $0x298] sm:$0xff]
        %v534 = vld [vmem:[#allocation7 + $0x2a0] sm:$0xff]
        %v535 = vld [vmem:[#allocation7 + $0x2a8] sm:$0xff]
        %v536 = vld [vmem:[#allocation7 + $0x2b0] sm:$0xff]
        %v537 = vld [vmem:[#allocation7 + $0x2b8] sm:$0xff]
        %v538 = vld [vmem:[#allocation7 + $0x2c0] sm:$0xff]
        %v539 = vld [vmem:[#allocation7 + $0x2c8] sm:$0xff]
        %v540 = vld [vmem:[#allocation7 + $0x2d0] sm:$0xff]
        %v541 = vld [vmem:[#allocation7 + $0x2d8] sm:$0xff]
        %v542 = vld [vmem:[#allocation7 + $0x2e0] sm:$0xff]
        %v543 = vld [vmem:[#allocation7 + $0x2e8] sm:$0xff]
        %v544 = vld [vmem:[#allocation7 + $0x2f0] sm:$0xff]
        %v545 = vld [vmem:[#allocation7 + $0x2f8] sm:$0xff]
        %v546 = vld [vmem:[%s6] sm:$0x3f]
        %v548 = vlaneseq
        %v549 = vshrl.u32 %v548, 7
        %v550 = vsub.s32 0, %v549
        %v551 = vrot.slane %v546, %v550
        %v552 = vlaneseq
        %v553 = vshrl.u32 %v552, 7
        %v554 = vsub.s32 1, %v553
        %v555 = vrot.slane %v546, %v554
        %v556 = vlaneseq
        %v557 = vshrl.u32 %v556, 7
        %v558 = vsub.s32 2, %v557
        %v559 = vrot.slane %v546, %v558
        %v560 = vlaneseq
        %v561 = vshrl.u32 %v560, 7
        %v562 = vsub.s32 3, %v561
        %v563 = vrot.slane %v546, %v562
        %v564 = vlaneseq
        %v565 = vshrl.u32 %v564, 7
        %v566 = vsub.s32 4, %v565
        %v567 = vrot.slane %v546, %v566
        %v568 = vlaneseq
        %v569 = vshrl.u32 %v568, 7
        %v570 = vsub.s32 5, %v569
        %v571 = vrot.slane %v546, %v570
        %578 = vmatprep.subr.mxu0 %v541
        %579 = vmatpush1.msra.mxu0 %v540
        %580 = vmatprep.subr.mxu0 %v535
        %581 = vmatpush1.msra.mxu0 %v534
        %582 = vmatprep.subr.mxu0 %v529
        %583 = vmatpush1.msra.mxu0 %v528
        %584 = vmatprep.subr.mxu0 %v523
        %585 = vmatpush1.msra.mxu0 %v522
        %586 = vmatprep.subr.mxu0 %v517
        %587 = vmatpush1.msra.mxu0 %v516
        %588 = vmatprep.subr.mxu0 %v511
        %589 = vmatpush1.msra.mxu0 %v510
        %590 = vmatprep.subr.mxu0 %v505
        %591 = vmatpush1.msra.mxu0 %v504
        %592 = vmatprep.subr.mxu0 %v499
        %593 = vmatpush1.msra.mxu0 %v498
        %594 = vmatprep.subr.mxu0 %v493
        %595 = vmatpush1.msra.mxu0 %v492
        %596 = vmatprep.subr.mxu0 %v487
        %597 = vmatpush1.msra.mxu0 %v486
        %598 = vmatprep.subr.mxu0 %v481
        %599 = vmatpush1.msra.mxu0 %v480
        %600 = vmatprep.subr.mxu0 %v475
        %601 = vmatpush1.msra.mxu0 %v474
        %602 = vmatprep.subr.mxu0 %v469
        %603 = vmatpush1.msra.mxu0 %v468
        %604 = vmatprep.subr.mxu0 %v463
        %605 = vmatpush1.msra.mxu0 %v462
        %606 = vmatprep.subr.mxu0 %v457
        %607 = vmatpush1.msra.mxu0 %v456
        %608 = vmatprep.subr.mxu0 %v451
        %609 = vmatpush1.msra.mxu0 %v450
        %610 = vmatprep.subr.mxu0 0.0
        %611 = vmatpush2.msra.mxu0 0.0
        %612 = vmatprep.subr.mxu0 0.0
        %613 = vmatpush2.msra.mxu0 0.0
        %614 = vmatprep.subr.mxu0 0.0
        %615 = vmatpush2.msra.mxu0 0.0
        %616 = vmatprep.subr.mxu0 0.0
        %617 = vmatpush2.msra.mxu0 0.0
        %618 = vmatprep.subr.mxu0 0.0
        %619 = vmatpush2.msra.mxu0 0.0
        %620 = vmatprep.subr.mxu0 0.0
        %621 = vmatpush2.msra.mxu0 0.0
        %622 = vmatprep.subr.mxu0 0.0
        %623 = vmatpush2.msra.mxu0 0.0
        %624 = vmatprep.subr.mxu0 0.0
        %625 = vmatpush2.msra.mxu0 0.0
        %626 = vmatprep.subr.mxu0 0.0
        %627 = vmatpush2.msra.mxu0 0.0
        %628 = vmatprep.subr.mxu0 0.0
        %629 = vmatpush2.msra.mxu0 0.0
        %630 = vmatprep.subr.mxu0 0.0
        %631 = vmatpush2.msra.mxu0 0.0
        %632 = vmatprep.subr.mxu0 0.0
        %633 = vmatpush2.msra.mxu0 0.0
        %634 = vmatprep.subr.mxu0 0.0
        %635 = vmatpush2.msra.mxu0 0.0
        %636 = vmatprep.subr.mxu0 0.0
        %637 = vmatpush2.msra.mxu0 0.0
        %638 = vmatprep.subr.mxu0 0.0
        %639 = vmatpush2.msra.mxu0 0.0
        %640 = vmatprep.subr.mxu0 0.0
        %641 = vmatpush2.msra.mxu0 0.0
        %642 = vmatprep.mubr.f32.mxu0 0.0
        %643 = vmatmul.mubr.f32.gmra.mxu0 %v449
        %v644 = vpop.f32.mrf.mxu0
        %v645 = vadd.f32 %v551, %v644
        %v646 = vpop.f32.mrf.mxu0
        %v647 = vadd.f32 %v555, %v646
        %648 = vdwg.mxu0
        %649 = vmatprep.subr.mxu0 %v543
        %650 = vmatpush1.msra.mxu0 %v542
        %651 = vmatprep.subr.mxu0 %v537
        %652 = vmatpush1.msra.mxu0 %v536
        %653 = vmatprep.subr.mxu0 %v531
        %654 = vmatpush1.msra.mxu0 %v530
        %655 = vmatprep.subr.mxu0 %v525
        %656 = vmatpush1.msra.mxu0 %v524
        %657 = vmatprep.subr.mxu0 %v519
        %658 = vmatpush1.msra.mxu0 %v518
        %659 = vmatprep.subr.mxu0 %v513
        %660 = vmatpush1.msra.mxu0 %v512
        %661 = vmatprep.subr.mxu0 %v507
        %662 = vmatpush1.msra.mxu0 %v506
        %663 = vmatprep.subr.mxu0 %v501
        %664 = vmatpush1.msra.mxu0 %v500
        %665 = vmatprep.subr.mxu0 %v495
        %666 = vmatpush1.msra.mxu0 %v494
        %667 = vmatprep.subr.mxu0 %v489
        %668 = vmatpush1.msra.mxu0 %v488
        %669 = vmatprep.subr.mxu0 %v483
        %670 = vmatpush1.msra.mxu0 %v482
        %671 = vmatprep.subr.mxu0 %v477
        %672 = vmatpush1.msra.mxu0 %v476
        %673 = vmatprep.subr.mxu0 %v471
        %674 = vmatpush1.msra.mxu0 %v470
        %675 = vmatprep.subr.mxu0 %v465
        %676 = vmatpush1.msra.mxu0 %v464
        %677 = vmatprep.subr.mxu0 %v459
        %678 = vmatpush1.msra.mxu0 %v458
        %679 = vmatprep.subr.mxu0 %v453
        %680 = vmatpush1.msra.mxu0 %v452
        %681 = vmatprep.subr.mxu0 0.0
        %682 = vmatpush2.msra.mxu0 0.0
        %683 = vmatprep.subr.mxu0 0.0
        %684 = vmatpush2.msra.mxu0 0.0
        %685 = vmatprep.subr.mxu0 0.0
        %686 = vmatpush2.msra.mxu0 0.0
        %687 = vmatprep.subr.mxu0 0.0
        %688 = vmatpush2.msra.mxu0 0.0
        %689 = vmatprep.subr.mxu0 0.0
        %690 = vmatpush2.msra.mxu0 0.0
        %691 = vmatprep.subr.mxu0 0.0
        %692 = vmatpush2.msra.mxu0 0.0
        %693 = vmatprep.subr.mxu0 0.0
        %694 = vmatpush2.msra.mxu0 0.0
        %695 = vmatprep.subr.mxu0 0.0
        %696 = vmatpush2.msra.mxu0 0.0
        %697 = vmatprep.subr.mxu0 0.0
        %698 = vmatpush2.msra.mxu0 0.0
        %699 = vmatprep.subr.mxu0 0.0
        %700 = vmatpush2.msra.mxu0 0.0
        %701 = vmatprep.subr.mxu0 0.0
        %702 = vmatpush2.msra.mxu0 0.0
        %703 = vmatprep.subr.mxu0 0.0
        %704 = vmatpush2.msra.mxu0 0.0
        %705 = vmatprep.subr.mxu0 0.0
        %706 = vmatpush2.msra.mxu0 0.0
        %707 = vmatprep.subr.mxu0 0.0
        %708 = vmatpush2.msra.mxu0 0.0
        %709 = vmatprep.subr.mxu0 0.0
        %710 = vmatpush2.msra.mxu0 0.0
        %711 = vmatprep.subr.mxu0 0.0
        %712 = vmatpush2.msra.mxu0 0.0
        %713 = vmatprep.mubr.f32.mxu0 0.0
        %714 = vmatmul.mubr.f32.gmra.mxu0 %v449
        %v715 = vpop.f32.mrf.mxu0
        %v716 = vadd.f32 %v559, %v715
        %v717 = vpop.f32.mrf.mxu0
        %v718 = vadd.f32 %v563, %v717
        %719 = vdwg.mxu0
        %720 = vmatprep.subr.mxu0 %v545
        %721 = vmatpush1.msra.mxu0 %v544
        %722 = vmatprep.subr.mxu0 %v539
        %723 = vmatpush1.msra.mxu0 %v538
        %724 = vmatprep.subr.mxu0 %v533
        %725 = vmatpush1.msra.mxu0 %v532
        %726 = vmatprep.subr.mxu0 %v527
        %727 = vmatpush1.msra.mxu0 %v526
        %728 = vmatprep.subr.mxu0 %v521
        %729 = vmatpush1.msra.mxu0 %v520
        %730 = vmatprep.subr.mxu0 %v515
        %731 = vmatpush1.msra.mxu0 %v514
        %732 = vmatprep.subr.mxu0 %v509
        %733 = vmatpush1.msra.mxu0 %v508
        %734 = vmatprep.subr.mxu0 %v503
        %735 = vmatpush1.msra.mxu0 %v502
        %736 = vmatprep.subr.mxu0 %v497
        %737 = vmatpush1.msra.mxu0 %v496
        %738 = vmatprep.subr.mxu0 %v491
        %739 = vmatpush1.msra.mxu0 %v490
        %740 = vmatprep.subr.mxu0 %v485
        %741 = vmatpush1.msra.mxu0 %v484
        %742 = vmatprep.subr.mxu0 %v479
        %743 = vmatpush1.msra.mxu0 %v478
        %744 = vmatprep.subr.mxu0 %v473
        %745 = vmatpush1.msra.mxu0 %v472
        %746 = vmatprep.subr.mxu0 %v467
        %747 = vmatpush1.msra.mxu0 %v466
        %748 = vmatprep.subr.mxu0 %v461
        %749 = vmatpush1.msra.mxu0 %v460
        %750 = vmatprep.subr.mxu0 %v455
        %751 = vmatpush1.msra.mxu0 %v454
        %752 = vmatprep.subr.mxu0 0.0
        %753 = vmatpush2.msra.mxu0 0.0
        %754 = vmatprep.subr.mxu0 0.0
        %755 = vmatpush2.msra.mxu0 0.0
        %756 = vmatprep.subr.mxu0 0.0
        %757 = vmatpush2.msra.mxu0 0.0
        %758 = vmatprep.subr.mxu0 0.0
        %759 = vmatpush2.msra.mxu0 0.0
        %760 = vmatprep.subr.mxu0 0.0
        %761 = vmatpush2.msra.mxu0 0.0
        %762 = vmatprep.subr.mxu0 0.0
        %763 = vmatpush2.msra.mxu0 0.0
        %764 = vmatprep.subr.mxu0 0.0
        %765 = vmatpush2.msra.mxu0 0.0
        %766 = vmatprep.subr.mxu0 0.0
        %767 = vmatpush2.msra.mxu0 0.0
        %768 = vmatprep.subr.mxu0 0.0
        %769 = vmatpush2.msra.mxu0 0.0
        %770 = vmatprep.subr.mxu0 0.0
        %771 = vmatpush2.msra.mxu0 0.0
        %772 = vmatprep.subr.mxu0 0.0
        %773 = vmatpush2.msra.mxu0 0.0
        %774 = vmatprep.subr.mxu0 0.0
        %775 = vmatpush2.msra.mxu0 0.0
        %776 = vmatprep.subr.mxu0 0.0
        %777 = vmatpush2.msra.mxu0 0.0
        %778 = vmatprep.subr.mxu0 0.0
        %779 = vmatpush2.msra.mxu0 0.0
        %780 = vmatprep.subr.mxu0 0.0
        %781 = vmatpush2.msra.mxu0 0.0
        %782 = vmatprep.subr.mxu0 0.0
        %783 = vmatpush2.msra.mxu0 0.0
        %784 = vmatprep.mubr.f32.mxu0 0.0
        %785 = vmatmul.mubr.f32.gmra.mxu0 %v449
        %v786 = vpop.f32.mrf.mxu0
        %v787 = vadd.f32 %v567, %v786
        %v788 = vpop.f32.mrf.mxu0
        %v789 = vadd.f32 %v571, %v788
        %790 = vdwg.mxu0
        %791 = vst [vmem:[%s322] sm:$0xff] %v645
        %792 = vst [vmem:[%s322 + $0x8] sm:$0xff] %v647
        %793 = vst [vmem:[%s322 + $0x10] sm:$0xff] %v716
        %794 = vst [vmem:[%s322 + $0x18] sm:$0xff] %v718
        %795 = vst [vmem:[%s322 + $0x20] sm:$0xff] %v787
        %796 = vst [vmem:[%s322 + $0x28] sm:$0xff] %v789
        %s797 = sand.u32 %s185, 1
        %s798 = scalar_lea.sflag [#allocation4], %s797
        %s799 = sand.u32 %s185, 1
        %s800 = smul.addr %s799, 48
        %s801 = scalar_lea.vmem [#allocation8], %s800
        // Predicated region
        $region61: #{tpu_custom_call.1} parent=47 // pred_check
          %p802 = pneg %p195
        $region62: #{tpu_custom_call.1} parent=47 // pred_check_branch
          %804 = sbr.rel (%p802) target = $region64
        $region63: #{tpu_custom_call.1} parent=47 // pred_region
          %s806 = ssub.s32 768, 768
          %807 = vsyncadd %s798, %s806
          %s808 = smul.addr %s25, 6
          %s809 = smul.addr %s808, 128
          %s810 = scalar_lea.hbm %s7, %s809
          %s812 = sshll.u32 %s801, 4
          %s813 = int_to_ptr.vmem [resolvable:$true] %s812
          %815 = dma.vmem_to_hbm [thread:$0]  %s813, 768, %s810, %s798
        $region64: #{tpu_custom_call.1} parent=47 // pred_fallthru
          _
      $region48: #{tpu_custom_call.1} parent=5 // pred_fallthru
        _
      %p816 = scmp.le.s32.totalorder 2, %s20
      // Predicated region
      $region65: #{tpu_custom_call.1} parent=5 // pred_check
        %p817 = pneg %p816
      $region66: #{tpu_custom_call.1} parent=5 // pred_check_branch
        %819 = sbr.rel (%p817) target = $region68
      $region67: #{tpu_custom_call.1} parent=5 // pred_region
        %s820 = ssub.s32 %s20, 2
        // Predicated region
        $region69: #{tpu_custom_call.1} parent=67 // pred_check
          %p821 = pneg %p201
        $region70: #{tpu_custom_call.1} parent=67 // pred_check_branch
          %823 = sbr.rel (%p821) target = $region72
        $region71: #{tpu_custom_call.1} parent=67 // pred_region
          %s824 = sand.u32 %s186, 1
          %s825 = scalar_lea.sflag [#allocation4], %s824
          %s826 = sand.u32 %s186, 1
          %s827 = smul.addr %s826, 48
          %s828 = scalar_lea.vmem [#allocation8], %s827
          %829 = dma.done %s825, 768
        $region72: #{tpu_custom_call.1} parent=67 // pred_fallthru
          _
      $region68: #{tpu_custom_call.1} parent=5 // pred_fallthru
        _
    $region6: #{tpu_custom_call.1} parent=1 // loop_footer
      %s24 = sadd.s32 1, %s20
    $region7: #{tpu_custom_call.1} parent=1 // loop_footer_branch
      %19 = sbr.rel target = $region3
    $region8: #{tpu_custom_call.1} parent=1 // loop_exit
      _
    %830 = vsyncpa [#allocation3], 1
    %s831 = scalar_lea.sflag [#allocation3], 1
    %832 = vsyncpa %s831, 1
    %833 = vsyncpa [#allocation6], 1
    %834 = vsyncpa [#allocation4], 1
    %s835 = scalar_lea.sflag [#allocation4], 1
    %836 = vsyncpa %s835, 1

// kernel: tpu_custom_call.1
$region0: #{tpu_custom_call.1}
  #allocation0 [shape = 'u32[]', space=smem, size = 0x4, offset = 0x4, fixed_abs, tag = 'smem constant byte address 0x4 - core index']
  #allocation1 [shape = 'u32[144,128]{1,0:T(1,128)}', space=vmem, size = 0x12000, scoped, tag = 'internal scratch']
  %s0 = inlined_call_operand.hbm [shape: f32[16,128], index: 0, kind: input, shape index: {}]
  %s1 = inlined_call_operand.hbm [shape: f32[128,128], index: 1, kind: input, shape index: {}]
  %s2 = inlined_call_operand.vmem [shape: f32[1,128], index: 2, kind: input, shape index: {}]
  %s3 = inlined_call_operand.vmem [shape: f32[1,128], index: 3, kind: input, shape index: {}]
  %s4 = inlined_call_operand.vmem [shape: f32[1,128], index: 4, kind: input, shape index: {}]
  %s5 = inlined_call_operand.hbm [shape: f32[128,768], index: 5, kind: input, shape index: {}]
  %s6 = inlined_call_operand.vmem [shape: f32[1,768], index: 6, kind: input, shape index: {}]
  %s7 = inlined_call_operand.hbm [shape: f32[16,768], index: 7, kind: output, shape index: {}]
  %s8 = sld [smem:[#allocation0]]
  $region73: #{tpu_custom_call.1} parent=0
    _
  %s10 = ssub.s32 1, %s8
  %s11 = scalar_select 0, %s10, %s8
  $region1: #{tpu_custom_call.1} parent=0
    #allocation2 [shape = 'u8[8192]{0}', space=vmem, size = 0x2000, scoped, tag = 'input window, operand 0']
    #allocation3 [shape = 's32[2]{0}', space=sflag, size = 0x8, scoped, tag = 'scoped memory for tpu_custom_call.1']
    #allocation4 [shape = 's32[2]{0}', space=sflag, size = 0x8, scoped, tag = 'scoped memory for tpu_custom_call.1']
    #allocation5 [shape = 'u8[65536]{0}', space=vmem, size = 0x10000, scoped, tag = 'input window, operand 1, single buffered']
    #allocation6 [shape = 's32[1]{0}', space=sflag, size = 0x4, scoped, tag = 'scoped memory for tpu_custom_call.1']
    #allocation7 [shape = 'u8[393216]{0}', space=vmem, size = 0x60000, scoped, tag = 'input window, operand 5, single buffered']
    #allocation8 [shape = 'u8[49152]{0}', space=vmem, size = 0xc000, scoped, tag = 'output window, operand 0']
    %12 = vsyncpa [#allocation3], 0
    %s13 = scalar_lea.sflag [#allocation3], 1
    %14 = vsyncpa %s13, 0
    %15 = vsyncpa [#allocation6], 0
    %16 = vsyncpa [#allocation4], 0
    %s17 = scalar_lea.sflag [#allocation4], 1
    %18 = vsyncpa %s17, 0
    loop: start=0, step=1, limit=4
    $region2: #{tpu_custom_call.1} parent=1 // loop_pre_header
      _
    $region3: #{tpu_custom_call.1} parent=1 // loop_header
      %s20 = sphi 0, %s24
      %p21 = scmp.ge.s32.totalorder %s20, 4
      %s30 = sphi 0, %s32
      %s33 = sphi 0, %s30
      %s34 = sphi 0, %s33
      %s50 = sphi 0, %s34
      %s54 = sphi 0, %s54
      %s56 = sphi 0, %s54
      %s57 = sphi 0, %s56
      %s71 = sphi 0, %s57
      %s75 = sphi 0, %s75
      %s77 = sphi 0, %s75
      %s78 = sphi 0, %s77
      %s92 = sphi 0, %s78
      %s96 = sphi 0, %s96
      %s98 = sphi 0, %s96
      %s99 = sphi 0, %s98
      %s113 = sphi 0, %s99
      %s117 = sphi 0, %s117
      %s119 = sphi 0, %s117
      %s120 = sphi 0, %s119
      %s134 = sphi 0, %s120
      %s138 = sphi 0, %s138
      %s140 = sphi 0, %s138
      %s141 = sphi 0, %s140
      %s155 = sphi 0, %s141
      %s159 = sphi 0, %s159
      %s161 = sphi 0, %s159
      %s162 = sphi 0, %s161
      %s176 = sphi 0, %s162
      %s182 = sphi 0, %s184
      %s185 = sphi 0, %s182
      %s186 = sphi 0, %s185
      %s202 = sphi 0, %s186
    $region4: #{tpu_custom_call.1} parent=1 // loop_header_branch
      %23 = sbr.rel (%p21) target = $region8
    $region5: #{tpu_custom_call.1} parent=1 // loop_body
      %s25 = ssub.s32 %s20, 1
      %s26 = ssub.s32 %s20, 2
      %s27 = sadd.s32 %s20, 1
      %s28 = ssub.s32 %s20, %s27
      %p29 = scmp.eq.s32.totalorder %s28, 0
      %s31 = sadd.s32 %s30, 1
      %s32 = scalar_select %p29, %s30, %s31
      %p35 = pneg %p29
      %p36 = scmp.eq.s32.totalorder %s20, 1
      %p37 = por %p35, %p36
      %p38 = scmp.ne.s32.totalorder %s30, %s33
      %p39 = scmp.eq.s32.totalorder %s20, 0
      %p40 = por %p38, %p39
      %p41 = scmp.ne.s32.totalorder %s30, %s33
      %p42 = scmp.eq.s32.totalorder %s25, 1
      %p43 = por %p41, %p42
      %p44 = scmp.ne.s32.totalorder %s33, %s34
      %p45 = scmp.eq.s32.totalorder %s25, 0
      %p46 = por %p44, %p45
      %p47 = scmp.ne.s32.totalorder %s33, %s34
      %p48 = scmp.eq.s32.totalorder %s26, 1
      %p49 = por %p47, %p48
      %p51 = scmp.ne.s32.totalorder %s34, %s50
      %p52 = scmp.eq.s32.totalorder %s26, 0
      %p53 = por %p51, %p52
      %s55 = sadd.s32 %s54, 1
      %p58 = scmp.eq.s32.totalorder %s20, 1
      %p59 = scmp.ne.s32.totalorder %s54, %s56
      %p60 = scmp.eq.s32.totalorder %s20, 0
      %p61 = por %p59, %p60
      %p62 = scmp.ne.s32.totalorder %s54, %s56
      %p63 = scmp.eq.s32.totalorder %s25, 1
      %p64 = por %p62, %p63
      %p65 = scmp.ne.s32.totalorder %s56, %s57
      %p66 = scmp.eq.s32.totalorder %s25, 0
      %p67 = por %p65, %p66
      %p68 = scmp.ne.s32.totalorder %s56, %s57
      %p69 = scmp.eq.s32.totalorder %s26, 1
      %p70 = por %p68, %p69
      %p72 = scmp.ne.s32.totalorder %s57, %s71
      %p73 = scmp.eq.s32.totalorder %s26, 0
      %p74 = por %p72, %p73
      %s76 = sadd.s32 %s75, 1
      %p79 = scmp.eq.s32.totalorder %s20, 1
      %p80 = scmp.ne.s32.totalorder %s75, %s77
      %p81 = scmp.eq.s32.totalorder %s20, 0
      %p82 = por %p80, %p81
      %p83 = scmp.ne.s32.totalorder %s75, %s77
      %p84 = scmp.eq.s32.totalorder %s25, 1
      %p85 = por %p83, %p84
      %p86 = scmp.ne.s32.totalorder %s77, %s78
      %p87 = scmp.eq.s32.totalorder %s25, 0
      %p88 = por %p86, %p87
      %p89 = scmp.ne.s32.totalorder %s77, %s78
      %p90 = scmp.eq.s32.totalorder %s26, 1
      %p91 = por %p89, %p90
      %p93 = scmp.ne.s32.totalorder %s78, %s92
      %p94 = scmp.eq.s32.totalorder %s26, 0
      %p95 = por %p93, %p94
      %s97 = sadd.s32 %s96, 1
      %p100 = scmp.eq.s32.totalorder %s20, 1
      %p101 = scmp.ne.s32.totalorder %s96, %s98
      %p102 = scmp.eq.s32.totalorder %s20, 0
      %p103 = por %p101, %p102
      %p104 = scmp.ne.s32.totalorder %s96, %s98
      %p105 = scmp.eq.s32.totalorder %s25, 1
      %p106 = por %p104, %p105
      %p107 = scmp.ne.s32.totalorder %s98, %s99
      %p108 = scmp.eq.s32.totalorder %s25, 0
      %p109 = por %p107, %p108
      %p110 = scmp.ne.s32.totalorder %s98, %s99
      %p111 = scmp.eq.s32.totalorder %s26, 1
      %p112 = por %p110, %p111
      %p114 = scmp.ne.s32.totalorder %s99, %s113
      %p115 = scmp.eq.s32.totalorder %s26, 0
      %p116 = por %p114, %p115
      %s118 = sadd.s32 %s117, 1
      %p121 = scmp.eq.s32.totalorder %s20, 1
      %p122 = scmp.ne.s32.totalorder %s117, %s119
      %p123 = scmp.eq.s32.totalorder %s20, 0
      %p124 = por %p122, %p123
      %p125 = scmp.ne.s32.totalorder %s117, %s119
      %p126 = scmp.eq.s32.totalorder %s25, 1
      %p127 = por %p125, %p126
      %p128 = scmp.ne.s32.totalorder %s119, %s120
      %p129 = scmp.eq.s32.totalorder %s25, 0
      %p130 = por %p128, %p129
      %p131 = scmp.ne.s32.totalorder %s119, %s120
      %p132 = scmp.eq.s32.totalorder %s26, 1
      %p133 = por %p131, %p132
      %p135 = scmp.ne.s32.totalorder %s120, %s134
      %p136 = scmp.eq.s32.totalorder %s26, 0
      %p137 = por %p135, %p136
      %s139 = sadd.s32 %s138, 1
      %p142 = scmp.eq.s32.totalorder %s20, 1
      %p143 = scmp.ne.s32.totalorder %s138, %s140
      %p144 = scmp.eq.s32.totalorder %s20, 0
      %p145 = por %p143, %p144
      %p146 = scmp.ne.s32.totalorder %s138, %s140
      %p147 = scmp.eq.s32.totalorder %s25, 1
      %p148 = por %p146, %p147
      %p149 = scmp.ne.s32.totalorder %s140, %s141
      %p150 = scmp.eq.s32.totalorder %s25, 0
      %p151 = por %p149, %p150
      %p152 = scmp.ne.s32.totalorder %s140, %s141
      %p153 = scmp.eq.s32.totalorder %s26, 1
      %p154 = por %p152, %p153
      %p156 = scmp.ne.s32.totalorder %s141, %s155
      %p157 = scmp.eq.s32.totalorder %s26, 0
      %p158 = por %p156, %p157
      %s160 = sadd.s32 %s159, 1
      %p163 = scmp.eq.s32.totalorder %s20, 1
      %p164 = scmp.ne.s32.totalorder %s159, %s161
      %p165 = scmp.eq.s32.totalorder %s20, 0
      %p166 = por %p164, %p165
      %p167 = scmp.ne.s32.totalorder %s159, %s161
      %p168 = scmp.eq.s32.totalorder %s25, 1
      %p169 = por %p167, %p168
      %p170 = scmp.ne.s32.totalorder %s161, %s162
      %p171 = scmp.eq.s32.totalorder %s25, 0
      %p172 = por %p170, %p171
      %p173 = scmp.ne.s32.totalorder %s161, %s162
      %p174 = scmp.eq.s32.totalorder %s26, 1
      %p175 = por %p173, %p174
      %p177 = scmp.ne.s32.totalorder %s162, %s176
      %p178 = scmp.eq.s32.totalorder %s26, 0
      %p179 = por %p177, %p178
      %s180 = ssub.s32 %s20, %s27
      %p181 = scmp.eq.s32.totalorder %s180, 0
      %s183 = sadd.s32 %s182, 1
      %s184 = scalar_select %p181, %s182, %s183
      %p187 = pneg %p181
      %p188 = scmp.eq.s32.totalorder %s20, 1
      %p189 = por %p187, %p188
      %p190 = scmp.ne.s32.totalorder %s182, %s185
      %p191 = scmp.eq.s32.totalorder %s20, 0
      %p192 = por %p190, %p191
      %p193 = scmp.ne.s32.totalorder %s182, %s185
      %p194 = scmp.eq.s32.totalorder %s25, 1
      %p195 = por %p193, %p194
      %p196 = scmp.ne.s32.totalorder %s185, %s186
      %p197 = scmp.eq.s32.totalorder %s25, 0
      %p198 = por %p196, %p197
      %p199 = scmp.ne.s32.totalorder %s185, %s186
      %p200 = scmp.eq.s32.totalorder %s26, 1
      %p201 = por %p199, %p200
      %p203 = scmp.ne.s32.totalorder %s186, %s202
      %p204 = scmp.eq.s32.totalorder %s26, 0
      %p205 = por %p203, %p204
      %p206 = scmp.le.s32.totalorder 1, %s20
      %p207 = scmp.lt.s32.totalorder %s20, 3
      %p208 = pnand %p206, %p207
      %p209 = pneg %p208
      // Predicated region
      $region9: #{tpu_custom_call.1} parent=5 // pred_check
        _
      $region10: #{tpu_custom_call.1} parent=5 // pred_check_branch
        %211 = sbr.rel (%p208) target = $region12
      $region11: #{tpu_custom_call.1} parent=5 // pred_region
        %s212 = ssub.s32 %s20, 1
        // Predicated region
        $region13: #{tpu_custom_call.1} parent=11 // pred_check
          %p213 = pneg %p67
        $region14: #{tpu_custom_call.1} parent=11 // pred_check_branch
          %215 = sbr.rel (%p213) target = $region16
        $region15: #{tpu_custom_call.1} parent=11 // pred_region
          %s217 = ssub.s32 2048, 2048
          %218 = vsyncadd [#allocation6], %s217
          %s219 = sshll.u32 [#allocation5], 4
          %s220 = int_to_ptr.vmem [resolvable:$true] %s219
          %225 = dma.hbm_to_vmem [thread:$0]  %s1, 2048, %s220, [#allocation6], 128, 128, 8
        $region16: #{tpu_custom_call.1} parent=11 // pred_fallthru
          _
        // Predicated region
        $region17: #{tpu_custom_call.1} parent=11 // pred_check
          %p226 = pneg %p88
        $region18: #{tpu_custom_call.1} parent=11 // pred_check_branch
          %228 = sbr.rel (%p226) target = $region20
        $region19: #{tpu_custom_call.1} parent=11 // pred_region
          _
        $region20: #{tpu_custom_call.1} parent=11 // pred_fallthru
          _
        // Predicated region
        $region21: #{tpu_custom_call.1} parent=11 // pred_check
          %p229 = pneg %p109
        $region22: #{tpu_custom_call.1} parent=11 // pred_check_branch
          %231 = sbr.rel (%p229) target = $region24
        $region23: #{tpu_custom_call.1} parent=11 // pred_region
          _
        $region24: #{tpu_custom_call.1} parent=11 // pred_fallthru
          _
        // Predicated region
        $region25: #{tpu_custom_call.1} parent=11 // pred_check
          %p232 = pneg %p130
        $region26: #{tpu_custom_call.1} parent=11 // pred_check_branch
          %234 = sbr.rel (%p232) target = $region28
        $region27: #{tpu_custom_call.1} parent=11 // pred_region
          _
        $region28: #{tpu_custom_call.1} parent=11 // pred_fallthru
          _
        // Predicated region
        $region29: #{tpu_custom_call.1} parent=11 // pred_check
          %p235 = pneg %p151
        $region30: #{tpu_custom_call.1} parent=11 // pred_check_branch
          %237 = sbr.rel (%p235) target = $region32
        $region31: #{tpu_custom_call.1} parent=11 // pred_region
          %s239 = ssub.s32 12288, 12288
          %240 = vsyncadd [#allocation6], %s239
          %s241 = sshll.u32 [#allocation7], 4
          %s242 = int_to_ptr.vmem [resolvable:$true] %s241
          %247 = dma.hbm_to_vmem [thread:$0]  %s5, 12288, %s242, [#allocation6], 768, 768, 48
        $region32: #{tpu_custom_call.1} parent=11 // pred_fallthru
          _
        // Predicated region
        $region33: #{tpu_custom_call.1} parent=11 // pred_check
          %p248 = pneg %p172
        $region34: #{tpu_custom_call.1} parent=11 // pred_check_branch
          %250 = sbr.rel (%p248) target = $region36
        $region35: #{tpu_custom_call.1} parent=11 // pred_region
          _
        $region36: #{tpu_custom_call.1} parent=11 // pred_fallthru
          _
      $region12: #{tpu_custom_call.1} parent=5 // pred_fallthru
        _
      %p251 = scmp.lt.s32.totalorder %s20, 2
      // Predicated region
      $region37: #{tpu_custom_call.1} parent=5 // pred_check
        %p252 = pneg %p251
      $region38: #{tpu_custom_call.1} parent=5 // pred_check_branch
        %254 = sbr.rel (%p252) target = $region40
      $region39: #{tpu_custom_call.1} parent=5 // pred_region
        // Predicated region
        $region41: #{tpu_custom_call.1} parent=39 // pred_check
          %p255 = pneg %p40
        $region42: #{tpu_custom_call.1} parent=39 // pred_check_branch
          %257 = sbr.rel (%p255) target = $region44
        $region43: #{tpu_custom_call.1} parent=39 // pred_region
          %s258 = sand.u32 %s30, 1
          %s259 = scalar_lea.sflag [#allocation3], %s258
          %s260 = sand.u32 %s30, 1
          %s261 = smul.addr %s260, 8
          %s262 = scalar_lea.vmem [#allocation2], %s261
          %s264 = ssub.s32 128, 128
          %265 = vsyncadd %s259, %s264
          %s266 = smul.addr %s20, 128
          %s267 = scalar_lea.hbm %s0, %s266
          %s269 = sshll.u32 %s262, 4
          %s270 = int_to_ptr.vmem [resolvable:$true] %s269
          %272 = dma.hbm_to_vmem [thread:$0]  %s267, 128, %s270, %s259
        $region44: #{tpu_custom_call.1} parent=39 // pred_fallthru
          _
      $region40: #{tpu_custom_call.1} parent=5 // pred_fallthru
        _
      %p273 = scmp.le.s32.totalorder 1, %s20
      %p274 = scmp.lt.s32.totalorder %s20, 3
      %p275 = pnand %p273, %p274
      %p276 = pneg %p275
      // Predicated region
      $region45: #{tpu_custom_call.1} parent=5 // pred_check
        _
      $region46: #{tpu_custom_call.1} parent=5 // pred_check_branch
        %278 = sbr.rel (%p275) target = $region48
      $region47: #{tpu_custom_call.1} parent=5 // pred_region
        %s279 = ssub.s32 %s20, 1
        %s280 = sand.u32 %s33, 1
        %s281 = scalar_lea.sflag [#allocation3], %s280
        %s282 = sand.u32 %s33, 1
        %s283 = smul.addr %s282, 8
        %s284 = scalar_lea.vmem [#allocation2], %s283
        // Predicated region
        $region49: #{tpu_custom_call.1} parent=47 // pred_check
          %p285 = pneg %p46
        $region50: #{tpu_custom_call.1} parent=47 // pred_check_branch
          %287 = sbr.rel (%p285) target = $region52
        $region51: #{tpu_custom_call.1} parent=47 // pred_region
          %288 = dma.done %s281, 128
        $region52: #{tpu_custom_call.1} parent=47 // pred_fallthru
          _
        // Predicated region
        $region53: #{tpu_custom_call.1} parent=47 // pred_check
          %p289 = pneg %p67
        $region54: #{tpu_custom_call.1} parent=47 // pred_check_branch
          %291 = sbr.rel (%p289) target = $region56
        $region55: #{tpu_custom_call.1} parent=47 // pred_region
          %292 = dma.done [#allocation6], 2048
        $region56: #{tpu_custom_call.1} parent=47 // pred_fallthru
          _
        // Predicated region
        $region57: #{tpu_custom_call.1} parent=47 // pred_check
          %p293 = pneg %p151
        $region58: #{tpu_custom_call.1} parent=47 // pred_check_branch
          %295 = sbr.rel (%p293) target = $region60
        $region59: #{tpu_custom_call.1} parent=47 // pred_region
          %296 = dma.done [#allocation6], 12288
        $region60: #{tpu_custom_call.1} parent=47 // pred_fallthru
          _
        %s297 = sand.u32 %s33, 1
        %s298 = scalar_lea.sflag [#allocation3], %s297
        %s299 = sand.u32 %s33, 1
        %s300 = smul.addr %s299, 8
        %s301 = scalar_lea.vmem [#allocation2], %s300
        %p302 = pneg %p46
        %p303 = pneg %p43
        %p304 = pneg %p67
        %p305 = pneg %p64
        %p306 = pneg %p88
        %p307 = pneg %p85
        %p308 = pneg %p109
        %p309 = pneg %p106
        %p310 = pneg %p130
        %p311 = pneg %p127
        %p312 = pneg %p151
        %p313 = pneg %p148
        %p314 = pneg %p172
        %p315 = pneg %p169
        %p316 = pneg %p198
        %p317 = pneg %p195
        %s318 = sand.u32 %s185, 1
        %s319 = scalar_lea.sflag [#allocation4], %s318
        %s320 = sand.u32 %s185, 1
        %s321 = smul.addr %s320, 48
        %s322 = scalar_lea.vmem [#allocation8], %s321
        %v323 = vld [vmem:[%s284] sm:$0xff]
        %v324 = vld [vmem:[#allocation5] sm:$0xff]
        %v325 = vld [vmem:[#allocation5 + $0x8] sm:$0xff]
        %v326 = vld [vmem:[#allocation5 + $0x10] sm:$0xff]
        %v327 = vld [vmem:[#allocation5 + $0x18] sm:$0xff]
        %v328 = vld [vmem:[#allocation5 + $0x20] sm:$0xff]
        %v329 = vld [vmem:[#allocation5 + $0x28] sm:$0xff]
        %v330 = vld [vmem:[#allocation5 + $0x30] sm:$0xff]
        %v331 = vld [vmem:[#allocation5 + $0x38] sm:$0xff]
        %v332 = vld [vmem:[#allocation5 + $0x40] sm:$0xff]
        %v333 = vld [vmem:[#allocation5 + $0x48] sm:$0xff]
        %v334 = vld [vmem:[#allocation5 + $0x50] sm:$0xff]
        %v335 = vld [vmem:[#allocation5 + $0x58] sm:$0xff]
        %v336 = vld [vmem:[#allocation5 + $0x60] sm:$0xff]
        %v337 = vld [vmem:[#allocation5 + $0x68] sm:$0xff]
        %v338 = vld [vmem:[#allocation5 + $0x70] sm:$0xff]
        %v339 = vld [vmem:[#allocation5 + $0x78] sm:$0xff]
        %v340 = vld [vmem:[%s2] sm:$0x1]
        %v342 = vlaneseq
        %v343 = vshrl.u32 %v342, 7
        %v344 = vsub.s32 0, %v343
        %v345 = vrot.slane %v340, %v344
        %347 = vmatprep.subr.mxu0 0.0
        %348 = vmatpush1.msra.mxu0 %v339
        %349 = vmatprep.subr.mxu0 0.0
        %350 = vmatpush1.msra.mxu0 %v338
        %351 = vmatprep.subr.mxu0 0.0
        %352 = vmatpush1.msra.mxu0 %v337
        %353 = vmatprep.subr.mxu0 0.0
        %354 = vmatpush1.msra.mxu0 %v336
        %355 = vmatprep.subr.mxu0 0.0
        %356 = vmatpush1.msra.mxu0 %v335
        %357 = vmatprep.subr.mxu0 0.0
        %358 = vmatpush1.msra.mxu0 %v334
        %359 = vmatprep.subr.mxu0 0.0
        %360 = vmatpush1.msra.mxu0 %v333
        %361 = vmatprep.subr.mxu0 0.0
        %362 = vmatpush1.msra.mxu0 %v332
        %363 = vmatprep.subr.mxu0 0.0
        %364 = vmatpush1.msra.mxu0 %v331
        %365 = vmatprep.subr.mxu0 0.0
        %366 = vmatpush1.msra.mxu0 %v330
        %367 = vmatprep.subr.mxu0 0.0
        %368 = vmatpush1.msra.mxu0 %v329
        %369 = vmatprep.subr.mxu0 0.0
        %370 = vmatpush1.msra.mxu0 %v328
        %371 = vmatprep.subr.mxu0 0.0
        %372 = vmatpush1.msra.mxu0 %v327
        %373 = vmatprep.subr.mxu0 0.0
        %374 = vmatpush1.msra.mxu0 %v326
        %375 = vmatprep.subr.mxu0 0.0
        %376 = vmatpush1.msra.mxu0 %v325
        %377 = vmatprep.subr.mxu0 0.0
        %378 = vmatpush1.msra.mxu0 %v324
        %379 = vmatprep.subr.mxu0 0.0
        %380 = vmatpush2.msra.mxu0 0.0
        %381 = vmatprep.subr.mxu0 0.0
        %382 = vmatpush2.msra.mxu0 0.0
        %383 = vmatprep.subr.mxu0 0.0
        %384 = vmatpush2.msra.mxu0 0.0
        %385 = vmatprep.subr.mxu0 0.0
        %386 = vmatpush2.msra.mxu0 0.0
        %387 = vmatprep.subr.mxu0 0.0
        %388 = vmatpush2.msra.mxu0 0.0
        %389 = vmatprep.subr.mxu0 0.0
        %390 = vmatpush2.msra.mxu0 0.0
        %391 = vmatprep.subr.mxu0 0.0
        %392 = vmatpush2.msra.mxu0 0.0
        %393 = vmatprep.subr.mxu0 0.0
        %394 = vmatpush2.msra.mxu0 0.0
        %395 = vmatprep.subr.mxu0 0.0
        %396 = vmatpush2.msra.mxu0 0.0
        %397 = vmatprep.subr.mxu0 0.0
        %398 = vmatpush2.msra.mxu0 0.0
        %399 = vmatprep.subr.mxu0 0.0
        %400 = vmatpush2.msra.mxu0 0.0
        %401 = vmatprep.subr.mxu0 0.0
        %402 = vmatpush2.msra.mxu0 0.0
        %403 = vmatprep.subr.mxu0 0.0
        %404 = vmatpush2.msra.mxu0 0.0
        %405 = vmatprep.subr.mxu0 0.0
        %406 = vmatpush2.msra.mxu0 0.0
        %407 = vmatprep.subr.mxu0 0.0
        %408 = vmatpush2.msra.mxu0 0.0
        %409 = vmatprep.subr.mxu0 0.0
        %410 = vmatpush2.msra.mxu0 0.0
        %411 = vmatprep.mubr.f32.mxu0 0.0
        %412 = vmatmul.mubr.f32.gmra.mxu0 %v323
        %v413 = vpop.f32.mrf.mxu0
        %v414 = vadd.f32 %v345, %v413
        %v415 = vpop.f32.mrf.mxu0
        %416 = vdwg.mxu0
        %v417 = vmul.f32 %v414, 0.5
        %v418 = vmul.f32 %v414, 0.70710677
        %v419 = verf.f32.pop %v418
        %v420 = vadd.f32 %v419, 1.0
        %v421 = vmul.f32 %v417, %v420
        %422 = vadd.xlane.f32.xlu0 %v421
        %v423 = vpop.xlane.xlu0 %422
        %v424 = vrcp.pop 128.0
        %v425 = vmul.f32 %v423, %v424
        %v426 = vsub.f32 %v421, %v425
        %v427 = vmul.f32 %v426, %v426
        %428 = vadd.xlane.f32.xlu0 %v427
        %v429 = vpop.xlane.xlu0 %428
        %v430 = vmul.f32 %v429, %v424
        %v431 = vadd.f32 %v430, 1e-12
        %v432 = vrsqrt.pop %v431
        %v433 = vmul.f32 %v426, %v432
        %v434 = vld [vmem:[%s3] sm:$0x1]
        %v436 = vlaneseq
        %v437 = vshrl.u32 %v436, 7
        %v438 = vsub.s32 0, %v437
        %v439 = vrot.slane %v434, %v438
        %v441 = vmul.f32 %v433, %v439
        %v442 = vld [vmem:[%s4] sm:$0x1]
        %v444 = vlaneseq
        %v445 = vshrl.u32 %v444, 7
        %v446 = vsub.s32 0, %v445
        %v447 = vrot.slane %v442, %v446
        %v449 = vadd.f32 %v441, %v447
        %v450 = vld [vmem:[#allocation7] sm:$0xff]
        %v451 = vld [vmem:[#allocation7 + $0x8] sm:$0xff]
        %v452 = vld [vmem:[#allocation7 + $0x10] sm:$0xff]
        %v453 = vld [vmem:[#allocation7 + $0x18] sm:$0xff]
        %v454 = vld [vmem:[#allocation7 + $0x20] sm:$0xff]
        %v455 = vld [vmem:[#allocation7 + $0x28] sm:$0xff]
        %v456 = vld [vmem:[#allocation7 + $0x30] sm:$0xff]
        %v457 = vld [vmem:[#allocation7 + $0x38] sm:$0xff]
        %v458 = vld [vmem:[#allocation7 + $0x40] sm:$0xff]
        %v459 = vld [vmem:[#allocation7 + $0x48] sm:$0xff]
        %v460 = vld [vmem:[#allocation7 + $0x50] sm:$0xff]
        %v461 = vld [vmem:[#allocation7 + $0x58] sm:$0xff]
        %v462 = vld [vmem:[#allocation7 + $0x60] sm:$0xff]
        %v463 = vld [vmem:[#allocation7 + $0x68] sm:$0xff]
        %v464 = vld [vmem:[#allocation7 + $0x70] sm:$0xff]
        %v465 = vld [vmem:[#allocation7 + $0x78] sm:$0xff]
        %v466 = vld [vmem:[#allocation7 + $0x80] sm:$0xff]
        %v467 = vld [vmem:[#allocation7 + $0x88] sm:$0xff]
        %v468 = vld [vmem:[#allocation7 + $0x90] sm:$0xff]
        %v469 = vld [vmem:[#allocation7 + $0x98] sm:$0xff]
        %v470 = vld [vmem:[#allocation7 + $0xa0] sm:$0xff]
        %v471 = vld [vmem:[#allocation7 + $0xa8] sm:$0xff]
        %v472 = vld [vmem:[#allocation7 + $0xb0] sm:$0xff]
        %v473 = vld [vmem:[#allocation7 + $0xb8] sm:$0xff]
        %v474 = vld [vmem:[#allocation7 + $0xc0] sm:$0xff]
        %v475 = vld [vmem:[#allocation7 + $0xc8] sm:$0xff]
        %v476 = vld [vmem:[#allocation7 + $0xd0] sm:$0xff]
        %v477 = vld [vmem:[#allocation7 + $0xd8] sm:$0xff]
        %v478 = vld [vmem:[#allocation7 + $0xe0] sm:$0xff]
        %v479 = vld [vmem:[#allocation7 + $0xe8] sm:$0xff]
        %v480 = vld [vmem:[#allocation7 + $0xf0] sm:$0xff]
        %v481 = vld [vmem:[#allocation7 + $0xf8] sm:$0xff]
        %v482 = vld [vmem:[#allocation7 + $0x100] sm:$0xff]
        %v483 = vld [vmem:[#allocation7 + $0x108] sm:$0xff]
        %v484 = vld [vmem:[#allocation7 + $0x110] sm:$0xff]
        %v485 = vld [vmem:[#allocation7 + $0x118] sm:$0xff]
        %v486 = vld [vmem:[#allocation7 + $0x120] sm:$0xff]
        %v487 = vld [vmem:[#allocation7 + $0x128] sm:$0xff]
        %v488 = vld [vmem:[#allocation7 + $0x130] sm:$0xff]
        %v489 = vld [vmem:[#allocation7 + $0x138] sm:$0xff]
        %v490 = vld [vmem:[#allocation7 + $0x140] sm:$0xff]
        %v491 = vld [vmem:[#allocation7 + $0x148] sm:$0xff]
        %v492 = vld [vmem:[#allocation7 + $0x150] sm:$0xff]
        %v493 = vld [vmem:[#allocation7 + $0x158] sm:$0xff]
        %v494 = vld [vmem:[#allocation7 + $0x160] sm:$0xff]
        %v495 = vld [vmem:[#allocation7 + $0x168] sm:$0xff]
        %v496 = vld [vmem:[#allocation7 + $0x170] sm:$0xff]
        %v497 = vld [vmem:[#allocation7 + $0x178] sm:$0xff]
        %v498 = vld [vmem:[#allocation7 + $0x180] sm:$0xff]
        %v499 = vld [vmem:[#allocation7 + $0x188] sm:$0xff]
        %v500 = vld [vmem:[#allocation7 + $0x190] sm:$0xff]
        %v501 = vld [vmem:[#allocation7 + $0x198] sm:$0xff]
        %v502 = vld [vmem:[#allocation7 + $0x1a0] sm:$0xff]
        %v503 = vld [vmem:[#allocation7 + $0x1a8] sm:$0xff]
        %v504 = vld [vmem:[#allocation7 + $0x1b0] sm:$0xff]
        %v505 = vld [vmem:[#allocation7 + $0x1b8] sm:$0xff]
        %v506 = vld [vmem:[#allocation7 + $0x1c0] sm:$0xff]
        %v507 = vld [vmem:[#allocation7 + $0x1c8] sm:$0xff]
        %v508 = vld [vmem:[#allocation7 + $0x1d0] sm:$0xff]
        %v509 = vld [vmem:[#allocation7 + $0x1d8] sm:$0xff]
        %v510 = vld [vmem:[#allocation7 + $0x1e0] sm:$0xff]
        %v511 = vld [vmem:[#allocation7 + $0x1e8] sm:$0xff]
        %v512 = vld [vmem:[#allocation7 + $0x1f0] sm:$0xff]
        %v513 = vld [vmem:[#allocation7 + $0x1f8] sm:$0xff]
        %v514 = vld [vmem:[#allocation7 + $0x200] sm:$0xff]
        %v515 = vld [vmem:[#allocation7 + $0x208] sm:$0xff]
        %v516 = vld [vmem:[#allocation7 + $0x210] sm:$0xff]
        %v517 = vld [vmem:[#allocation7 + $0x218] sm:$0xff]
        %v518 = vld [vmem:[#allocation7 + $0x220] sm:$0xff]
        %v519 = vld [vmem:[#allocation7 + $0x228] sm:$0xff]
        %v520 = vld [vmem:[#allocation7 + $0x230] sm:$0xff]
        %v521 = vld [vmem:[#allocation7 + $0x238] sm:$0xff]
        %v522 = vld [vmem:[#allocation7 + $0x240] sm:$0xff]
        %v523 = vld [vmem:[#allocation7 + $0x248] sm:$0xff]
        %v524 = vld [vmem:[#allocation7 + $0x250] sm:$0xff]
        %v525 = vld [vmem:[#allocation7 + $0x258] sm:$0xff]
        %v526 = vld [vmem:[#allocation7 + $0x260] sm:$0xff]
        %v527 = vld [vmem:[#allocation7 + $0x268] sm:$0xff]
        %v528 = vld [vmem:[#allocation7 + $0x270] sm:$0xff]
        %v529 = vld [vmem:[#allocation7 + $0x278] sm:$0xff]
        %v530 = vld [vmem:[#allocation7 + $0x280] sm:$0xff]
        %v531 = vld [vmem:[#allocation7 + $0x288] sm:$0xff]
        %v532 = vld [vmem:[#allocation7 + $0x290] sm:$0xff]
        %v533 = vld [vmem:[#allocation7 + $0x298] sm:$0xff]
        %v534 = vld [vmem:[#allocation7 + $0x2a0] sm:$0xff]
        %v535 = vld [vmem:[#allocation7 + $0x2a8] sm:$0xff]
        %v536 = vld [vmem:[#allocation7 + $0x2b0] sm:$0xff]
        %v537 = vld [vmem:[#allocation7 + $0x2b8] sm:$0xff]
        %v538 = vld [vmem:[#allocation7 + $0x2c0] sm:$0xff]
        %v539 = vld [vmem:[#allocation7 + $0x2c8] sm:$0xff]
        %v540 = vld [vmem:[#allocation7 + $0x2d0] sm:$0xff]
        %v541 = vld [vmem:[#allocation7 + $0x2d8] sm:$0xff]
        %v542 = vld [vmem:[#allocation7 + $0x2e0] sm:$0xff]
        %v543 = vld [vmem:[#allocation7 + $0x2e8] sm:$0xff]
        %v544 = vld [vmem:[#allocation7 + $0x2f0] sm:$0xff]
        %v545 = vld [vmem:[#allocation7 + $0x2f8] sm:$0xff]
        %v546 = vld [vmem:[%s6] sm:$0x3f]
        %v548 = vlaneseq
        %v549 = vshrl.u32 %v548, 7
        %v550 = vsub.s32 0, %v549
        %v551 = vrot.slane %v546, %v550
        %v552 = vlaneseq
        %v553 = vshrl.u32 %v552, 7
        %v554 = vsub.s32 1, %v553
        %v555 = vrot.slane %v546, %v554
        %v556 = vlaneseq
        %v557 = vshrl.u32 %v556, 7
        %v558 = vsub.s32 2, %v557
        %v559 = vrot.slane %v546, %v558
        %v560 = vlaneseq
        %v561 = vshrl.u32 %v560, 7
        %v562 = vsub.s32 3, %v561
        %v563 = vrot.slane %v546, %v562
        %v564 = vlaneseq
        %v565 = vshrl.u32 %v564, 7
        %v566 = vsub.s32 4, %v565
        %v567 = vrot.slane %v546, %v566
        %v568 = vlaneseq
        %v569 = vshrl.u32 %v568, 7
        %v570 = vsub.s32 5, %v569
        %v571 = vrot.slane %v546, %v570
        %578 = vmatprep.subr.mxu0 %v541
        %579 = vmatpush1.msra.mxu0 %v540
        %580 = vmatprep.subr.mxu0 %v535
        %581 = vmatpush1.msra.mxu0 %v534
        %582 = vmatprep.subr.mxu0 %v529
        %583 = vmatpush1.msra.mxu0 %v528
        %584 = vmatprep.subr.mxu0 %v523
        %585 = vmatpush1.msra.mxu0 %v522
        %586 = vmatprep.subr.mxu0 %v517
        %587 = vmatpush1.msra.mxu0 %v516
        %588 = vmatprep.subr.mxu0 %v511
        %589 = vmatpush1.msra.mxu0 %v510
        %590 = vmatprep.subr.mxu0 %v505
        %591 = vmatpush1.msra.mxu0 %v504
        %592 = vmatprep.subr.mxu0 %v499
        %593 = vmatpush1.msra.mxu0 %v498
        %594 = vmatprep.subr.mxu0 %v493
        %595 = vmatpush1.msra.mxu0 %v492
        %596 = vmatprep.subr.mxu0 %v487
        %597 = vmatpush1.msra.mxu0 %v486
        %598 = vmatprep.subr.mxu0 %v481
        %599 = vmatpush1.msra.mxu0 %v480
        %600 = vmatprep.subr.mxu0 %v475
        %601 = vmatpush1.msra.mxu0 %v474
        %602 = vmatprep.subr.mxu0 %v469
        %603 = vmatpush1.msra.mxu0 %v468
        %604 = vmatprep.subr.mxu0 %v463
        %605 = vmatpush1.msra.mxu0 %v462
        %606 = vmatprep.subr.mxu0 %v457
        %607 = vmatpush1.msra.mxu0 %v456
        %608 = vmatprep.subr.mxu0 %v451
        %609 = vmatpush1.msra.mxu0 %v450
        %610 = vmatprep.subr.mxu0 0.0
        %611 = vmatpush2.msra.mxu0 0.0
        %612 = vmatprep.subr.mxu0 0.0
        %613 = vmatpush2.msra.mxu0 0.0
        %614 = vmatprep.subr.mxu0 0.0
        %615 = vmatpush2.msra.mxu0 0.0
        %616 = vmatprep.subr.mxu0 0.0
        %617 = vmatpush2.msra.mxu0 0.0
        %618 = vmatprep.subr.mxu0 0.0
        %619 = vmatpush2.msra.mxu0 0.0
        %620 = vmatprep.subr.mxu0 0.0
        %621 = vmatpush2.msra.mxu0 0.0
        %622 = vmatprep.subr.mxu0 0.0
        %623 = vmatpush2.msra.mxu0 0.0
        %624 = vmatprep.subr.mxu0 0.0
        %625 = vmatpush2.msra.mxu0 0.0
        %626 = vmatprep.subr.mxu0 0.0
        %627 = vmatpush2.msra.mxu0 0.0
        %628 = vmatprep.subr.mxu0 0.0
        %629 = vmatpush2.msra.mxu0 0.0
        %630 = vmatprep.subr.mxu0 0.0
        %631 = vmatpush2.msra.mxu0 0.0
        %632 = vmatprep.subr.mxu0 0.0
        %633 = vmatpush2.msra.mxu0 0.0
        %634 = vmatprep.subr.mxu0 0.0
        %635 = vmatpush2.msra.mxu0 0.0
        %636 = vmatprep.subr.mxu0 0.0
        %637 = vmatpush2.msra.mxu0 0.0
        %638 = vmatprep.subr.mxu0 0.0
        %639 = vmatpush2.msra.mxu0 0.0
        %640 = vmatprep.subr.mxu0 0.0
        %641 = vmatpush2.msra.mxu0 0.0
        %642 = vmatprep.mubr.f32.mxu0 0.0
        %643 = vmatmul.mubr.f32.gmra.mxu0 %v449
        %v644 = vpop.f32.mrf.mxu0
        %v645 = vadd.f32 %v551, %v644
        %v646 = vpop.f32.mrf.mxu0
        %v647 = vadd.f32 %v555, %v646
        %648 = vdwg.mxu0
        %649 = vmatprep.subr.mxu0 %v543
        %650 = vmatpush1.msra.mxu0 %v542
        %651 = vmatprep.subr.mxu0 %v537
        %652 = vmatpush1.msra.mxu0 %v536
        %653 = vmatprep.subr.mxu0 %v531
        %654 = vmatpush1.msra.mxu0 %v530
        %655 = vmatprep.subr.mxu0 %v525
        %656 = vmatpush1.msra.mxu0 %v524
        %657 = vmatprep.subr.mxu0 %v519
        %658 = vmatpush1.msra.mxu0 %v518
        %659 = vmatprep.subr.mxu0 %v513
        %660 = vmatpush1.msra.mxu0 %v512
        %661 = vmatprep.subr.mxu0 %v507
        %662 = vmatpush1.msra.mxu0 %v506
        %663 = vmatprep.subr.mxu0 %v501
        %664 = vmatpush1.msra.mxu0 %v500
        %665 = vmatprep.subr.mxu0 %v495
        %666 = vmatpush1.msra.mxu0 %v494
        %667 = vmatprep.subr.mxu0 %v489
        %668 = vmatpush1.msra.mxu0 %v488
        %669 = vmatprep.subr.mxu0 %v483
        %670 = vmatpush1.msra.mxu0 %v482
        %671 = vmatprep.subr.mxu0 %v477
        %672 = vmatpush1.msra.mxu0 %v476
        %673 = vmatprep.subr.mxu0 %v471
        %674 = vmatpush1.msra.mxu0 %v470
        %675 = vmatprep.subr.mxu0 %v465
        %676 = vmatpush1.msra.mxu0 %v464
        %677 = vmatprep.subr.mxu0 %v459
        %678 = vmatpush1.msra.mxu0 %v458
        %679 = vmatprep.subr.mxu0 %v453
        %680 = vmatpush1.msra.mxu0 %v452
        %681 = vmatprep.subr.mxu0 0.0
        %682 = vmatpush2.msra.mxu0 0.0
        %683 = vmatprep.subr.mxu0 0.0
        %684 = vmatpush2.msra.mxu0 0.0
        %685 = vmatprep.subr.mxu0 0.0
        %686 = vmatpush2.msra.mxu0 0.0
        %687 = vmatprep.subr.mxu0 0.0
        %688 = vmatpush2.msra.mxu0 0.0
        %689 = vmatprep.subr.mxu0 0.0
        %690 = vmatpush2.msra.mxu0 0.0
        %691 = vmatprep.subr.mxu0 0.0
        %692 = vmatpush2.msra.mxu0 0.0
        %693 = vmatprep.subr.mxu0 0.0
        %694 = vmatpush2.msra.mxu0 0.0
        %695 = vmatprep.subr.mxu0 0.0
        %696 = vmatpush2.msra.mxu0 0.0
        %697 = vmatprep.subr.mxu0 0.0
        %698 = vmatpush2.msra.mxu0 0.0
        %699 = vmatprep.subr.mxu0 0.0
        %700 = vmatpush2.msra.mxu0 0.0
        %701 = vmatprep.subr.mxu0 0.0
        %702 = vmatpush2.msra.mxu0 0.0
        %703 = vmatprep.subr.mxu0 0.0
        %704 = vmatpush2.msra.mxu0 0.0
        %705 = vmatprep.subr.mxu0 0.0
        %706 = vmatpush2.msra.mxu0 0.0
        %707 = vmatprep.subr.mxu0 0.0
        %708 = vmatpush2.msra.mxu0 0.0
        %709 = vmatprep.subr.mxu0 0.0
        %710 = vmatpush2.msra.mxu0 0.0
        %711 = vmatprep.subr.mxu0 0.0
        %712 = vmatpush2.msra.mxu0 0.0
        %713 = vmatprep.mubr.f32.mxu0 0.0
        %714 = vmatmul.mubr.f32.gmra.mxu0 %v449
        %v715 = vpop.f32.mrf.mxu0
        %v716 = vadd.f32 %v559, %v715
        %v717 = vpop.f32.mrf.mxu0
        %v718 = vadd.f32 %v563, %v717
        %719 = vdwg.mxu0
        %720 = vmatprep.subr.mxu0 %v545
        %721 = vmatpush1.msra.mxu0 %v544
        %722 = vmatprep.subr.mxu0 %v539
        %723 = vmatpush1.msra.mxu0 %v538
        %724 = vmatprep.subr.mxu0 %v533
        %725 = vmatpush1.msra.mxu0 %v532
        %726 = vmatprep.subr.mxu0 %v527
        %727 = vmatpush1.msra.mxu0 %v526
        %728 = vmatprep.subr.mxu0 %v521
        %729 = vmatpush1.msra.mxu0 %v520
        %730 = vmatprep.subr.mxu0 %v515
        %731 = vmatpush1.msra.mxu0 %v514
        %732 = vmatprep.subr.mxu0 %v509
        %733 = vmatpush1.msra.mxu0 %v508
        %734 = vmatprep.subr.mxu0 %v503
        %735 = vmatpush1.msra.mxu0 %v502
        %736 = vmatprep.subr.mxu0 %v497
        %737 = vmatpush1.msra.mxu0 %v496
        %738 = vmatprep.subr.mxu0 %v491
        %739 = vmatpush1.msra.mxu0 %v490
        %740 = vmatprep.subr.mxu0 %v485
        %741 = vmatpush1.msra.mxu0 %v484
        %742 = vmatprep.subr.mxu0 %v479
        %743 = vmatpush1.msra.mxu0 %v478
        %744 = vmatprep.subr.mxu0 %v473
        %745 = vmatpush1.msra.mxu0 %v472
        %746 = vmatprep.subr.mxu0 %v467
        %747 = vmatpush1.msra.mxu0 %v466
        %748 = vmatprep.subr.mxu0 %v461
        %749 = vmatpush1.msra.mxu0 %v460
        %750 = vmatprep.subr.mxu0 %v455
        %751 = vmatpush1.msra.mxu0 %v454
        %752 = vmatprep.subr.mxu0 0.0
        %753 = vmatpush2.msra.mxu0 0.0
        %754 = vmatprep.subr.mxu0 0.0
        %755 = vmatpush2.msra.mxu0 0.0
        %756 = vmatprep.subr.mxu0 0.0
        %757 = vmatpush2.msra.mxu0 0.0
        %758 = vmatprep.subr.mxu0 0.0
        %759 = vmatpush2.msra.mxu0 0.0
        %760 = vmatprep.subr.mxu0 0.0
        %761 = vmatpush2.msra.mxu0 0.0
        %762 = vmatprep.subr.mxu0 0.0
        %763 = vmatpush2.msra.mxu0 0.0
        %764 = vmatprep.subr.mxu0 0.0
        %765 = vmatpush2.msra.mxu0 0.0
        %766 = vmatprep.subr.mxu0 0.0
        %767 = vmatpush2.msra.mxu0 0.0
        %768 = vmatprep.subr.mxu0 0.0
        %769 = vmatpush2.msra.mxu0 0.0
        %770 = vmatprep.subr.mxu0 0.0
        %771 = vmatpush2.msra.mxu0 0.0
        %772 = vmatprep.subr.mxu0 0.0
        %773 = vmatpush2.msra.mxu0 0.0
        %774 = vmatprep.subr.mxu0 0.0
        %775 = vmatpush2.msra.mxu0 0.0
        %776 = vmatprep.subr.mxu0 0.0
        %777 = vmatpush2.msra.mxu0 0.0
        %778 = vmatprep.subr.mxu0 0.0
        %779 = vmatpush2.msra.mxu0 0.0
        %780 = vmatprep.subr.mxu0 0.0
        %781 = vmatpush2.msra.mxu0 0.0
        %782 = vmatprep.subr.mxu0 0.0
        %783 = vmatpush2.msra.mxu0 0.0
        %784 = vmatprep.mubr.f32.mxu0 0.0
        %785 = vmatmul.mubr.f32.gmra.mxu0 %v449
        %v786 = vpop.f32.mrf.mxu0
        %v787 = vadd.f32 %v567, %v786
        %v788 = vpop.f32.mrf.mxu0
        %v789 = vadd.f32 %v571, %v788
        %790 = vdwg.mxu0
        %791 = vst [vmem:[%s322] sm:$0xff] %v645
        %792 = vst [vmem:[%s322 + $0x8] sm:$0xff] %v647
        %793 = vst [vmem:[%s322 + $0x10] sm:$0xff] %v716
        %794 = vst [vmem:[%s322 + $0x18] sm:$0xff] %v718
        %795 = vst [vmem:[%s322 + $0x20] sm:$0xff] %v787
        %796 = vst [vmem:[%s322 + $0x28] sm:$0xff] %v789
        %s797 = sand.u32 %s185, 1
        %s798 = scalar_lea.sflag [#allocation4], %s797
        %s799 = sand.u32 %s185, 1
        %s800 = smul.addr %s799, 48
        %s801 = scalar_lea.vmem [#allocation8], %s800
        // Predicated region
        $region61: #{tpu_custom_call.1} parent=47 // pred_check
          %p802 = pneg %p195
        $region62: #{tpu_custom_call.1} parent=47 // pred_check_branch
          %804 = sbr.rel (%p802) target = $region64
        $region63: #{tpu_custom_call.1} parent=47 // pred_region
          %s806 = ssub.s32 768, 768
          %807 = vsyncadd %s798, %s806
          %s808 = smul.addr %s25, 6
          %s809 = smul.addr %s808, 128
          %s810 = scalar_lea.hbm %s7, %s809
          %s812 = sshll.u32 %s801, 4
          %s813 = int_to_ptr.vmem [resolvable:$true] %s812
          %815 = dma.vmem_to_hbm [thread:$0]  %s813, 768, %s810, %s798
        $region64: #{tpu_custom_call.1} parent=47 // pred_fallthru
          _
      $region48: #{tpu_custom_call.1} parent=5 // pred_fallthru
        _
      %p816 = scmp.le.s32.totalorder 2, %s20
      // Predicated region
      $region65: #{tpu_custom_call.1} parent=5 // pred_check
        %p817 = pneg %p816
      $region66: #{tpu_custom_call.1} parent=5 // pred_check_branch
        %819 = sbr.rel (%p817) target = $region68
      $region67: #{tpu_custom_call.1} parent=5 // pred_region
        %s820 = ssub.s32 %s20, 2
        // Predicated region
        $region69: #{tpu_custom_call.1} parent=67 // pred_check
          %p821 = pneg %p201
        $region70: #{tpu_custom_call.1} parent=67 // pred_check_branch
          %823 = sbr.rel (%p821) target = $region72
        $region71: #{tpu_custom_call.1} parent=67 // pred_region
          %s824 = sand.u32 %s186, 1
          %s825 = scalar_lea.sflag [#allocation4], %s824
          %s826 = sand.u32 %s186, 1
          %s827 = smul.addr %s826, 48
          %s828 = scalar_lea.vmem [#allocation8], %s827
          %829 = dma.done %s825, 768
        $region72: #{tpu_custom_call.1} parent=67 // pred_fallthru
          _
      $region68: #{tpu_custom_call.1} parent=5 // pred_fallthru
        _
    $region6: #{tpu_custom_call.1} parent=1 // loop_footer
      %s24 = sadd.s32 1, %s20
    $region7: #{tpu_custom_call.1} parent=1 // loop_footer_branch
      %19 = sbr.rel target = $region3
    $region8: #{tpu_custom_call.1} parent=1 // loop_exit
      _
    %830 = vsyncpa [#allocation3], 1
    %s831 = scalar_lea.sflag [#allocation3], 1
    %832 = vsyncpa %s831, 1
    %833 = vsyncpa [#allocation6], 1
    %834 = vsyncpa [#allocation4], 1
    %s835 = scalar_lea.sflag [#allocation4], 1
    %836 = vsyncpa %s835, 1

</llo_original>
